<compile_context>
chip_gen: v5e
topology: v5e:2x2
jax: 0.10.0
libtpu: 0.0.40
codegen_flags: <defaults>
</compile_context>

<pallas_src>
import functools

import jax
import jax.numpy as jnp
from jax.experimental import pallas as pl
from jax.experimental.pallas import tpu as pltpu

_F_PAD = 128  # lane-dense feature width (kernel assumes all feature dims <= 128)


def _round_up(x, m):
    return ((x + m - 1) // m) * m


def _fused_gnn_kernel(a_ref, x0_ref, wcat_ref, b_ref, o_ref, xbuf0, xbuf1,
                      *, tile_n, num_tiles, total_layers):
    """grid = (total_layers, num_row_tiles); layer axis outermost / sequential.

    a_ref    [tile_n, N_pad]  bf16  row-tile of dense adjacency (A[i,j] = #edges j->i)
    x0_ref   [N_pad, 128]     bf16  padded input features (constant block index)
    wcat_ref [1, 256, 128]    bf16  this layer's [W_rel^T ; W_root^T] (fused K=256)
    b_ref    [1, 1, 128]      f32   this layer's bias
    o_ref    [tile_n, 128]    f32   output tile (written only on the last layer)
    xbuf0/1  [N_pad, 128]     bf16  VMEM ping-pong activation carry (static refs)
    """
    l = pl.program_id(0)
    i = pl.program_id(1)

    # Seed the activation carry with the input features at the very first grid
    # step; after that the activations never touch HBM again.
    @pl.when((l == 0) & (i == 0))
    def _():
        xbuf0[...] = x0_ref[...]

    def layer_step(x_src, x_dst):
        x_all = x_src[...]                                   # [N_pad, 128] bf16

        # Neighbour add-aggregation for this tile of destination rows
        # (MXU, bf16 operands, f32 accumulation).
        agg = jnp.dot(a_ref[...], x_all, preferred_element_type=jnp.float32)

        if num_tiles == 1:
            x_tile = x_all
            row0 = 0
        else:
            row0 = pl.multiple_of(i * tile_n, tile_n)
            x_tile = x_src[pl.ds(row0, tile_n), :]           # [tile_n, 128]

        # GraphConv: agg @ W_rel^T + x @ W_root^T + b, fused into ONE K=256
        # matmul so the 256-deep MXUs (v6e/v7x) are fully fed.
        feats = jnp.concatenate([agg.astype(jnp.bfloat16), x_tile], axis=-1)
        out = jnp.dot(feats, wcat_ref[0],
                      preferred_element_type=jnp.float32) + b_ref[0]

        is_last = l == total_layers - 1

        @pl.when(jnp.logical_not(is_last))
        def _():
            y = jnp.tanh(out).astype(x_dst.dtype)
            if num_tiles == 1:
                x_dst[...] = y
            else:
                x_dst[pl.ds(row0, tile_n), :] = y

        @pl.when(is_last)
        def _():
            # sigmoid(x) = 1 / (1 + exp(-x)); exp and the approximate
            # reciprocal both run on the otherwise-idle EUP slot.
            o_ref[...] = pl.reciprocal(1.0 + jnp.exp(-out),
                                       approx=True).astype(o_ref.dtype)

    # Static even/odd branches instead of a dynamic slot index, guaranteeing
    # the matmuls read the activation scratch directly (zero-copy operand feed).
    @pl.when(l % 2 == 0)
    def _():
        layer_step(xbuf0, xbuf1)

    @pl.when(l % 2 == 1)
    def _():
        layer_step(xbuf1, xbuf0)


def _plan(n_pad0):
    """Generation-aware VMEM plan -> (tile_n, n_pad, vmem_need_bytes, capacity)."""
    try:
        cap = int(pltpu.get_tpu_info().vmem_capacity_bytes)
    except Exception:  # conservative fallback if the query is unavailable
        cap = 64 * 1024 * 1024
    usable = (cap * 4) // 5  # headroom for Mosaic-internal scratch / spills

    # Per-layer weights + bias, default double-buffered.
    wts = 2 * (2 * _F_PAD * _F_PAD * 2) + 2 * (8 * _F_PAD * 4)

    def fixed(n_pad):
        xbuf = 2 * n_pad * _F_PAD * 2        # ping-pong activation scratch (bf16)
        x0 = n_pad * _F_PAD * 2              # resident input block (Buffered(1))
        return xbuf + x0 + wts

    def need(tile, n_pad, a_buffers):
        a = a_buffers * tile * n_pad * 2     # bf16 adjacency tile(s)
        out = 2 * tile * _F_PAD * 4          # f32 output tile, double-buffered
        temps = tile * (_F_PAD * 4 + 2 * _F_PAD * 2 + _F_PAD * 4)  # agg/feats/out
        return fixed(n_pad) + a + out + temps

    # Whole-A resident across ALL layers (single-buffered): best regime, since
    # the dominant O(N^2) operand is DMA'd from HBM exactly once.
    if need(n_pad0, n_pad0, a_buffers=1) <= usable:
        return n_pad0, n_pad0, need(n_pad0, n_pad0, 1), cap

    # Streaming regime: double-buffered bf16 row tiles of A, re-fetched per layer.
    per_row = 4 * n_pad0 + 2 * _F_PAD * 4 + (_F_PAD * 4 + 2 * _F_PAD * 2 + _F_PAD * 4)
    tile = (usable - fixed(n_pad0)) // max(per_row, 1)
    tile = max(256, (tile // 256) * 256)
    while True:
        n_pad = _round_up(n_pad0, tile)
        nd = need(tile, n_pad, a_buffers=2)
        if nd <= usable or tile <= 256:
            break
        tile -= 256
    return tile, n_pad, nd, cap


def _make_call(kernel, n_pad, tile_n, num_tiles, total_layers, vmem_limit,
               single_buffer_resident):
    last = total_layers - 1

    def sb_kwargs():
        # Constant-block-index inputs do not need double buffering.
        return dict(pipeline_mode=pl.Buffered(1)) if single_buffer_resident else {}

    a_spec = pl.BlockSpec((tile_n, n_pad), lambda l, i: (i, 0),
                          **(sb_kwargs() if num_tiles == 1 else {}))
    x0_spec = pl.BlockSpec((n_pad, _F_PAD), lambda l, i: (0, 0), **sb_kwargs())
    w_spec = pl.BlockSpec((1, 2 * _F_PAD, _F_PAD), lambda l, i: (l, 0, 0))
    b_spec = pl.BlockSpec((1, 1, _F_PAD), lambda l, i: (l, 0, 0))
    # Non-final layers map to a constant output block so Pallas never writes
    # back uninitialised intermediate tiles to HBM.
    out_spec = pl.BlockSpec((tile_n, _F_PAD),
                            lambda l, i: (jnp.where(l == last, i, 0), 0))

    return pl.pallas_call(
        kernel,
        out_shape=jax.ShapeDtypeStruct((n_pad, _F_PAD), jnp.float32),
        grid=(total_layers, num_tiles),
        in_specs=[a_spec, x0_spec, w_spec, b_spec],
        out_specs=out_spec,
        scratch_shapes=[pltpu.VMEM((n_pad, _F_PAD), jnp.bfloat16),
                        pltpu.VMEM((n_pad, _F_PAD), jnp.bfloat16)],
        compiler_params=pltpu.CompilerParams(
            # Layer axis is sequential; row tiles share the activation scratch,
            # so both axes are "arbitrary".
            dimension_semantics=("arbitrary", "arbitrary"),
            vmem_limit_bytes=int(vmem_limit),
        ),
    )


def gnn_forward(x, edge_index, params):
    """Fused GNN forward (tanh hidden layers, sigmoid final) in one pallas_call."""
    x = jnp.asarray(x, jnp.float32)
    n, f_in = x.shape
    out_size = params[-1]["w_rel_t"].shape[1]
    total_layers = len(params)
    assert f_in <= _F_PAD and all(
        p["w_rel_t"].shape[0] <= _F_PAD and p["w_rel_t"].shape[1] <= _F_PAD
        for p in params), "this kernel assumes all feature dims <= 128"

    n_pad0 = _round_up(max(n, 16), 16)
    tile_n, n_pad, vmem_need, vmem_cap = _plan(n_pad0)
    num_tiles = n_pad // tile_n
    vmem_limit = min(vmem_cap, max(vmem_need + (4 << 20), 32 << 20))

    # Dense adjacency: A[i, j] = #edges j -> i (so add-aggregation == A @ x),
    # scattered directly into bf16 (exact for edge multiplicities < 256) --
    # no N^2 f32 intermediate.
    src, dst = edge_index[0], edge_index[1]
    a = jnp.zeros((n_pad, n_pad), jnp.bfloat16).at[dst, src].add(
        jnp.ones((), jnp.bfloat16))
    # TODO(synk): for the streaming regime, shrink A's HBM bytes further
    # (int8 + in-kernel upcast on v5e/v6e, fp8 on v7x) and add an HBM-carried
    # dual-TC variant for v7x; for graphs whose dense N x N adjacency exceeds
    # HBM, switch to a scalar-prefetch SpMM gather over the edge list.

    # Pad node features to 128 lanes, cast to bf16 for the MXU.
    x0 = jnp.zeros((n_pad, _F_PAD), jnp.bfloat16).at[:n, :f_in].set(
        x.astype(jnp.bfloat16))

    # Per-layer [W_rel^T ; W_root^T] stacked along K (one K=256 matmul) and
    # zero-padded to 128 lanes; zero weight/bias pads keep real columns exact.
    wcat = jnp.zeros((total_layers, 2 * _F_PAD, _F_PAD), jnp.bfloat16)
    bias = jnp.zeros((total_layers, 1, _F_PAD), jnp.float32)
    for li, p in enumerate(params):
        fi, fo = p["w_rel_t"].shape
        wcat = wcat.at[li, :fi, :fo].set(p["w_rel_t"].astype(jnp.bfloat16))
        wcat = wcat.at[li, _F_PAD:_F_PAD + fi, :fo].set(
            p["w_root_t"].astype(jnp.bfloat16))
        bias = bias.at[li, 0, :fo].set(p["bias"].astype(jnp.float32))

    kernel = functools.partial(_fused_gnn_kernel, tile_n=tile_n,
                               num_tiles=num_tiles, total_layers=total_layers)
    args = (a, x0, wcat, bias)
    try:
        out_padded = _make_call(kernel, n_pad, tile_n, num_tiles, total_layers,
                                vmem_limit, single_buffer_resident=True)(*args)
        out_padded = jax.block_until_ready(out_padded)
    except Exception:
        # Safety net if pl.Buffered(1) is unsupported by this JAX build:
        # fall back to default double buffering with a matching VMEM budget.
        fallback_limit = min(vmem_cap, max(2 * vmem_need + (4 << 20), 32 << 20))
        out_padded = _make_call(kernel, n_pad, tile_n, num_tiles, total_layers,
                                fallback_limit, single_buffer_resident=False)(*args)

    return out_padded[:n, :out_size]


def init_gnn_params(key, input_size, hidden_size, output_size, num_layers):
    """Deterministic parameter init mimicking the module's layer structure."""
    sizes = []
    in_sz = input_size
    for _ in range(num_layers):
        sizes.append((in_sz, hidden_size))
        in_sz = hidden_size
    sizes.append((in_sz, output_size))  # final layer

    params = []
    for (fi, fo) in sizes:
        key, k1, k2, k3 = jax.random.split(key, 4)
        scale = 1.0 / jnp.sqrt(jnp.float32(fi))
        w_rel = jax.random.uniform(k1, (fo, fi), jnp.float32, -scale, scale)
        w_root = jax.random.uniform(k2, (fo, fi), jnp.float32, -scale, scale)
        b = jax.random.uniform(k3, (fo,), jnp.float32, -scale, scale)
        params.append({
            "w_rel_t": w_rel.T,     # [F_in, F_out]
            "w_root_t": w_root.T,   # [F_in, F_out]
            "bias": b,              # [F_out]
        })
    return params


def reference_forward(x, edge_index, params):
    """Pure-JAX f32 reference matching the PyTorch module's math."""
    x = x.astype(jnp.float32)
    n = x.shape[0]
    a = jnp.zeros((n, n), jnp.float32).at[edge_index[1], edge_index[0]].add(1.0)
    for i, p in enumerate(params):
        out = (a @ x) @ p["w_rel_t"] + x @ p["w_root_t"] + p["bias"]
        x = jnp.tanh(out) if i < len(params) - 1 else jax.nn.sigmoid(out)
    return x


if __name__ == "__main__":
    # Small synthetic graph: 16 nodes, 4 input features, 32 hidden, 8 outputs.
    N = 16
    input_size = 4
    hidden_size = 32
    output_size = 8
    num_hidden_layers = 2
    E = 48

    key = jax.random.PRNGKey(0)
    kx, ke, kp = jax.random.split(key, 3)

    x = jax.random.normal(kx, (N, input_size), jnp.float32)
    edge_index = jax.random.randint(ke, (2, E), 0, N, dtype=jnp.int32)

    params = init_gnn_params(kp, input_size, hidden_size, output_size,
                             num_hidden_layers)

    out = gnn_forward(x, edge_index, params)
    out = jax.block_until_ready(out)

    ref = reference_forward(x, edge_index, params)
    assert out.shape == (N, output_size)
    # The kernel uses bf16 MXU operands (f32 accumulation), so compare against
    # the exact-f32 reference with a bf16-appropriate tolerance.
    assert jnp.allclose(out, ref, atol=4e-2, rtol=4e-2), (
        "mismatch vs JAX reference: max abs err "
        f"{float(jnp.max(jnp.abs(out - ref)))}")

    print("KERNEL_OK")
</pallas_src>

<mosaic_0001>
module attributes {stable_mosaic.version = 11 : i64} {
  func.func @_fused_gnn_kernel(%arg0: i32, %arg1: i32, %arg2: memref<16x16xbf16, #tpu.memory_space<vmem>>, %arg3: memref<16x128xbf16, #tpu.memory_space<vmem>>, %arg4: memref<1x256x128xbf16, #tpu.memory_space<vmem>>, %arg5: memref<1x1x128xf32, #tpu.memory_space<vmem>>, %arg6: memref<16x128xf32, #tpu.memory_space<vmem>>, %arg7: memref<16x128xbf16, #tpu.memory_space<vmem>>, %arg8: memref<16x128xbf16, #tpu.memory_space<vmem>>) attributes {dimension_semantics = [#tpu.dimension_semantics<arbitrary>, #tpu.dimension_semantics<arbitrary>], iteration_bounds = array<i64: 3, 1>, scalar_prefetch = 0 : i64, scratch_operands = 2 : i64, tpu.core_type = #tpu.core_type<tc>, window_params = [{pipeline_mode = #tpu.pipeline_mode<synchronous>, transform_indices = @transform_0, window_bounds = array<i64: 16, 16>}, {pipeline_mode = #tpu.pipeline_mode<synchronous>, transform_indices = @transform_1, window_bounds = array<i64: 16, 128>}, {transform_indices = @transform_2, window_bounds = array<i64: 1, 256, 128>}, {transform_indices = @transform_3, window_bounds = array<i64: 1, 1, 128>}, {transform_indices = @transform_4, window_bounds = array<i64: 16, 128>}]} {
    %c0_i32 = arith.constant 0 : i32
    %0 = arith.cmpi eq, %arg0, %c0_i32 : i32
    %c0_i32_0 = arith.constant 0 : i32
    %1 = arith.cmpi eq, %arg1, %c0_i32_0 : i32
    %2 = arith.andi %0, %1 : i1
    %3 = arith.extui %2 : i1 to i32
    %c0_i32_1 = arith.constant 0 : i32
    %4 = arith.cmpi ne, %3, %c0_i32_1 : i32
    scf.if %4 {
      %c0 = arith.constant 0 : index
      %c0_16 = arith.constant 0 : index
      %31 = vector.load %arg3[%c0, %c0_16] : memref<16x128xbf16, #tpu.memory_space<vmem>>, vector<16x128xbf16>
      %c0_17 = arith.constant 0 : index
      %c0_18 = arith.constant 0 : index
      %32 = vector.load %arg7[%c0_17, %c0_18] : memref<16x128xbf16, #tpu.memory_space<vmem>>, vector<16x128xbf16>
      tpu.vector_store %arg7[%c0_17, %c0_18], %31 {strides = array<i32>} : memref<16x128xbf16, #tpu.memory_space<vmem>>, vector<16x128xbf16>,
    } else {
    }
    %c2_i32 = arith.constant 2 : i32
    %c0_i32_2 = arith.constant 0 : i32
    %5 = arith.cmpi eq, %c2_i32, %c0_i32_2 : i32
    %c1_i32 = arith.constant 1 : i32
    %6 = arith.select %5, %c1_i32, %c2_i32 : i32
    %7 = arith.remsi %arg0, %6 : i32
    %c0_i32_3 = arith.constant 0 : i32
    %8 = arith.cmpi ne, %7, %c0_i32_3 : i32
    %c0_i32_4 = arith.constant 0 : i32
    %9 = arith.cmpi slt, %7, %c0_i32_4 : i32
    %c0_i32_5 = arith.constant 0 : i32
    %10 = arith.cmpi slt, %6, %c0_i32_5 : i32
    %11 = arith.xori %9, %10 : i1
    %12 = arith.andi %11, %8 : i1
    %13 = arith.addi %7, %6 : i32
    %14 = arith.select %12, %13, %7 : i32
    %c0_i32_6 = arith.constant 0 : i32
    %15 = arith.cmpi eq, %14, %c0_i32_6 : i32
    %16 = arith.extui %15 : i1 to i32
    %c0_i32_7 = arith.constant 0 : i32
    %17 = arith.cmpi ne, %16, %c0_i32_7 : i32
    scf.if %17 {
      %c0 = arith.constant 0 : index
      %c0_16 = arith.constant 0 : index
      %31 = vector.load %arg7[%c0, %c0_16] : memref<16x128xbf16, #tpu.memory_space<vmem>>, vector<16x128xbf16>
      %c0_17 = arith.constant 0 : index
      %c0_18 = arith.constant 0 : index
      %32 = vector.load %arg2[%c0_17, %c0_18] : memref<16x16xbf16, #tpu.memory_space<vmem>>, vector<16x16xbf16>
      %cst = arith.constant dense<0.000000e+00> : vector<16x128xf32>
      %33 = tpu.matmul %32, %31, %cst {dimension_numbers = #tpu.dot_dimension_numbers<[1], [0], [0], [1], [0, 0, 1, 1], [], []>} : vector<16x16xbf16>, vector<16x128xbf16>, vector<16x128xf32> -> vector<16x128xf32>
      %34 = arith.truncf %33 : vector<16x128xf32> to vector<16x128xbf16>
      %35 = tpu.concatenate %34, %31 in 1 : vector<16x128xbf16>, vector<16x128xbf16> -> vector<16x256xbf16>
      %c0_19 = arith.constant 0 : index
      %c0_20 = arith.constant 0 : index
      %c0_21 = arith.constant 0 : index
      %36 = vector.load %arg4[%c0_19, %c0_20, %c0_21] : memref<1x256x128xbf16, #tpu.memory_space<vmem>>, vector<1x256x128xbf16>
      %37 = vector.shape_cast %36 : vector<1x256x128xbf16> to vector<256x128xbf16>
      %cst_22 = arith.constant dense<0.000000e+00> : vector<16x128xf32>
      %38 = tpu.matmul %35, %37, %cst_22 {dimension_numbers = #tpu.dot_dimension_numbers<[1], [0], [0], [1], [0, 0, 1, 1], [], []>} : vector<16x256xbf16>, vector<256x128xbf16>, vector<16x128xf32> -> vector<16x128xf32>
      %c0_23 = arith.constant 0 : index
      %c0_24 = arith.constant 0 : index
      %c0_25 = arith.constant 0 : index
      %39 = vector.load %arg5[%c0_23, %c0_24, %c0_25] : memref<1x1x128xf32, #tpu.memory_space<vmem>>, vector<1x1x128xf32>
      %40 = vector.shape_cast %39 : vector<1x1x128xf32> to vector<1x128xf32>
      %41 = vector.broadcast %40 : vector<1x128xf32> to vector<16x128xf32>
      %42 = arith.addf %38, %41 : vector<16x128xf32>
      %c2_i32_26 = arith.constant 2 : i32
      %43 = arith.cmpi eq, %arg0, %c2_i32_26 : i32
      %true = arith.constant true
      %44 = arith.xori %43, %true : i1
      %45 = arith.extui %44 : i1 to i32
      %c0_i32_27 = arith.constant 0 : i32
      %46 = arith.cmpi ne, %45, %c0_i32_27 : i32
      scf.if %46 {
        %49 = math.tanh %42 : vector<16x128xf32>
        %50 = arith.truncf %49 : vector<16x128xf32> to vector<16x128xbf16>
        %c0_29 = arith.constant 0 : index
        %c0_30 = arith.constant 0 : index
        %51 = vector.load %arg8[%c0_29, %c0_30] : memref<16x128xbf16, #tpu.memory_space<vmem>>, vector<16x128xbf16>
        tpu.vector_store %arg8[%c0_29, %c0_30], %50 {strides = array<i32>} : memref<16x128xbf16, #tpu.memory_space<vmem>>, vector<16x128xbf16>,
      } else {
      }
      %47 = arith.extui %43 : i1 to i32
      %c0_i32_28 = arith.constant 0 : i32
      %48 = arith.cmpi ne, %47, %c0_i32_28 : i32
      scf.if %48 {
        %cst_29 = arith.constant 0.000000e+00 : f32
        %49 = vector.broadcast %cst_29 : f32 to vector<16x128xf32>
        %50 = arith.subf %49, %42 : vector<16x128xf32>
        %51 = math.exp %50 : vector<16x128xf32>
        %cst_30 = arith.constant 1.000000e+00 : f32
        %52 = vector.broadcast %cst_30 : f32 to vector<16x128xf32>
        %53 = arith.addf %52, %51 : vector<16x128xf32>
        %54 = tpu.reciprocal %53 {approx = true} : vector<16x128xf32> -> vector<16x128xf32>
        %c0_31 = arith.constant 0 : index
        %c0_32 = arith.constant 0 : index
        %55 = vector.load %arg6[%c0_31, %c0_32] : memref<16x128xf32, #tpu.memory_space<vmem>>, vector<16x128xf32>
        tpu.vector_store %arg6[%c0_31, %c0_32], %54 {strides = array<i32>} : memref<16x128xf32, #tpu.memory_space<vmem>>, vector<16x128xf32>,
      } else {
      }
    } else {
    }
    %c2_i32_8 = arith.constant 2 : i32
    %c0_i32_9 = arith.constant 0 : i32
    %18 = arith.cmpi eq, %c2_i32_8, %c0_i32_9 : i32
    %c1_i32_10 = arith.constant 1 : i32
    %19 = arith.select %18, %c1_i32_10, %c2_i32_8 : i32
    %20 = arith.remsi %arg0, %19 : i32
    %c0_i32_11 = arith.constant 0 : i32
    %21 = arith.cmpi ne, %20, %c0_i32_11 : i32
    %c0_i32_12 = arith.constant 0 : i32
    %22 = arith.cmpi slt, %20, %c0_i32_12 : i32
    %c0_i32_13 = arith.constant 0 : i32
    %23 = arith.cmpi slt, %19, %c0_i32_13 : i32
    %24 = arith.xori %22, %23 : i1
    %25 = arith.andi %24, %21 : i1
    %26 = arith.addi %20, %19 : i32
    %27 = arith.select %25, %26, %20 : i32
    %c1_i32_14 = arith.constant 1 : i32
    %28 = arith.cmpi eq, %27, %c1_i32_14 : i32
    %29 = arith.extui %28 : i1 to i32
    %c0_i32_15 = arith.constant 0 : i32
    %30 = arith.cmpi ne, %29, %c0_i32_15 : i32
    scf.if %30 {
      %c0 = arith.constant 0 : index
      %c0_16 = arith.constant 0 : index
      %31 = vector.load %arg8[%c0, %c0_16] : memref<16x128xbf16, #tpu.memory_space<vmem>>, vector<16x128xbf16>
      %c0_17 = arith.constant 0 : index
      %c0_18 = arith.constant 0 : index
      %32 = vector.load %arg2[%c0_17, %c0_18] : memref<16x16xbf16, #tpu.memory_space<vmem>>, vector<16x16xbf16>
      %cst = arith.constant dense<0.000000e+00> : vector<16x128xf32>
      %33 = tpu.matmul %32, %31, %cst {dimension_numbers = #tpu.dot_dimension_numbers<[1], [0], [0], [1], [0, 0, 1, 1], [], []>} : vector<16x16xbf16>, vector<16x128xbf16>, vector<16x128xf32> -> vector<16x128xf32>
      %34 = arith.truncf %33 : vector<16x128xf32> to vector<16x128xbf16>
      %35 = tpu.concatenate %34, %31 in 1 : vector<16x128xbf16>, vector<16x128xbf16> -> vector<16x256xbf16>
      %c0_19 = arith.constant 0 : index
      %c0_20 = arith.constant 0 : index
      %c0_21 = arith.constant 0 : index
      %36 = vector.load %arg4[%c0_19, %c0_20, %c0_21] : memref<1x256x128xbf16, #tpu.memory_space<vmem>>, vector<1x256x128xbf16>
      %37 = vector.shape_cast %36 : vector<1x256x128xbf16> to vector<256x128xbf16>
      %cst_22 = arith.constant dense<0.000000e+00> : vector<16x128xf32>
      %38 = tpu.matmul %35, %37, %cst_22 {dimension_numbers = #tpu.dot_dimension_numbers<[1], [0], [0], [1], [0, 0, 1, 1], [], []>} : vector<16x256xbf16>, vector<256x128xbf16>, vector<16x128xf32> -> vector<16x128xf32>
      %c0_23 = arith.constant 0 : index
      %c0_24 = arith.constant 0 : index
      %c0_25 = arith.constant 0 : index
      %39 = vector.load %arg5[%c0_23, %c0_24, %c0_25] : memref<1x1x128xf32, #tpu.memory_space<vmem>>, vector<1x1x128xf32>
      %40 = vector.shape_cast %39 : vector<1x1x128xf32> to vector<1x128xf32>
      %41 = vector.broadcast %40 : vector<1x128xf32> to vector<16x128xf32>
      %42 = arith.addf %38, %41 : vector<16x128xf32>
      %c2_i32_26 = arith.constant 2 : i32
      %43 = arith.cmpi eq, %arg0, %c2_i32_26 : i32
      %true = arith.constant true
      %44 = arith.xori %43, %true : i1
      %45 = arith.extui %44 : i1 to i32
      %c0_i32_27 = arith.constant 0 : i32
      %46 = arith.cmpi ne, %45, %c0_i32_27 : i32
      scf.if %46 {
        %49 = math.tanh %42 : vector<16x128xf32>
        %50 = arith.truncf %49 : vector<16x128xf32> to vector<16x128xbf16>
        %c0_29 = arith.constant 0 : index
        %c0_30 = arith.constant 0 : index
        %51 = vector.load %arg7[%c0_29, %c0_30] : memref<16x128xbf16, #tpu.memory_space<vmem>>, vector<16x128xbf16>
        tpu.vector_store %arg7[%c0_29, %c0_30], %50 {strides = array<i32>} : memref<16x128xbf16, #tpu.memory_space<vmem>>, vector<16x128xbf16>,
      } else {
      }
      %47 = arith.extui %43 : i1 to i32
      %c0_i32_28 = arith.constant 0 : i32
      %48 = arith.cmpi ne, %47, %c0_i32_28 : i32
      scf.if %48 {
        %cst_29 = arith.constant 0.000000e+00 : f32
        %49 = vector.broadcast %cst_29 : f32 to vector<16x128xf32>
        %50 = arith.subf %49, %42 : vector<16x128xf32>
        %51 = math.exp %50 : vector<16x128xf32>
        %cst_30 = arith.constant 1.000000e+00 : f32
        %52 = vector.broadcast %cst_30 : f32 to vector<16x128xf32>
        %53 = arith.addf %52, %51 : vector<16x128xf32>
        %54 = tpu.reciprocal %53 {approx = true} : vector<16x128xf32> -> vector<16x128xf32>
        %c0_31 = arith.constant 0 : index
        %c0_32 = arith.constant 0 : index
        %55 = vector.load %arg6[%c0_31, %c0_32] : memref<16x128xf32, #tpu.memory_space<vmem>>, vector<16x128xf32>
        tpu.vector_store %arg6[%c0_31, %c0_32], %54 {strides = array<i32>} : memref<16x128xf32, #tpu.memory_space<vmem>>, vector<16x128xf32>,
      } else {
      }
    } else {
    }
    return
  }
  func.func @transform_0(%arg0: i32, %arg1: i32) -> (i32, i32) {
    %c0_i32 = arith.constant 0 : i32
    %c0_i32_0 = arith.constant 0 : i32
    return %arg1, %c0_i32 : i32, i32
  }
  func.func @transform_1(%arg0: i32, %arg1: i32) -> (i32, i32) {
    %c0_i32 = arith.constant 0 : i32
    %c0_i32_0 = arith.constant 0 : i32
    %c0_i32_1 = arith.constant 0 : i32
    return %c0_i32, %c0_i32_0 : i32, i32
  }
  func.func @transform_2(%arg0: i32, %arg1: i32) -> (i32, i32, i32) {
    %c0_i32 = arith.constant 0 : i32
    %c0_i32_0 = arith.constant 0 : i32
    %c0_i32_1 = arith.constant 0 : i32
    return %arg0, %c0_i32, %c0_i32_0 : i32, i32, i32
  }
  func.func @transform_3(%arg0: i32, %arg1: i32) -> (i32, i32, i32) {
    %c0_i32 = arith.constant 0 : i32
    %c0_i32_0 = arith.constant 0 : i32
    %c0_i32_1 = arith.constant 0 : i32
    return %arg0, %c0_i32, %c0_i32_0 : i32, i32, i32
  }
  func.func @transform_4(%arg0: i32, %arg1: i32) -> (i32, i32) {
    %c2_i32 = arith.constant 2 : i32
    %0 = arith.cmpi eq, %arg0, %c2_i32 : i32
    %c0_i32 = arith.constant 0 : i32
    %1 = arith.select %0, %arg1, %c0_i32 : i32
    %c0_i32_0 = arith.constant 0 : i32
    %c0_i32_1 = arith.constant 0 : i32
    return %1, %c0_i32_0 : i32, i32
  }
}

module attributes {stable_mosaic.version = 11 : i64} {
  func.func @_fused_gnn_kernel(%arg0: i32, %arg1: i32, %arg2: memref<16x16xbf16, #tpu.memory_space<vmem>>, %arg3: memref<16x128xbf16, #tpu.memory_space<vmem>>, %arg4: memref<1x256x128xbf16, #tpu.memory_space<vmem>>, %arg5: memref<1x1x128xf32, #tpu.memory_space<vmem>>, %arg6: memref<16x128xf32, #tpu.memory_space<vmem>>, %arg7: memref<16x128xbf16, #tpu.memory_space<vmem>>, %arg8: memref<16x128xbf16, #tpu.memory_space<vmem>>) attributes {dimension_semantics = [#tpu.dimension_semantics<arbitrary>, #tpu.dimension_semantics<arbitrary>], iteration_bounds = array<i64: 3, 1>, scalar_prefetch = 0 : i64, scratch_operands = 2 : i64, tpu.core_type = #tpu.core_type<tc>, window_params = [{transform_indices = @transform_0, window_bounds = array<i64: 16, 16>}, {pipeline_mode = #tpu.pipeline_mode<synchronous>, transform_indices = @transform_1, window_bounds = array<i64: 16, 128>}, {transform_indices = @transform_2, window_bounds = array<i64: 1, 256, 128>}, {transform_indices = @transform_3, window_bounds = array<i64: 1, 1, 128>}, {transform_indices = @transform_4, window_bounds = array<i64: 16, 128>}]} {
    %c0_i32 = arith.constant 0 : i32
    %0 = arith.cmpi eq, %arg0, %c0_i32 : i32
    %c0_i32_0 = arith.constant 0 : i32
    %1 = arith.cmpi eq, %arg1, %c0_i32_0 : i32
    %2 = arith.andi %0, %1 : i1
    %3 = arith.extui %2 : i1 to i32
    %c0_i32_1 = arith.constant 0 : i32
    %4 = arith.cmpi ne, %3, %c0_i32_1 : i32
    scf.if %4 {
      %c0 = arith.constant 0 : index
      %c0_16 = arith.constant 0 : index
      %31 = vector.load %arg3[%c0, %c0_16] : memref<16x128xbf16, #tpu.memory_space<vmem>>, vector<16x128xbf16>
      %c0_17 = arith.constant 0 : index
      %c0_18 = arith.constant 0 : index
      %32 = vector.load %arg7[%c0_17, %c0_18] : memref<16x128xbf16, #tpu.memory_space<vmem>>, vector<16x128xbf16>
      tpu.vector_store %arg7[%c0_17, %c0_18], %31 {strides = array<i32>} : memref<16x128xbf16, #tpu.memory_space<vmem>>, vector<16x128xbf16>,
    } else {
    }
    %c2_i32 = arith.constant 2 : i32
    %c0_i32_2 = arith.constant 0 : i32
    %5 = arith.cmpi eq, %c2_i32, %c0_i32_2 : i32
    %c1_i32 = arith.constant 1 : i32
    %6 = arith.select %5, %c1_i32, %c2_i32 : i32
    %7 = arith.remsi %arg0, %6 : i32
    %c0_i32_3 = arith.constant 0 : i32
    %8 = arith.cmpi ne, %7, %c0_i32_3 : i32
    %c0_i32_4 = arith.constant 0 : i32
    %9 = arith.cmpi slt, %7, %c0_i32_4 : i32
    %c0_i32_5 = arith.constant 0 : i32
    %10 = arith.cmpi slt, %6, %c0_i32_5 : i32
    %11 = arith.xori %9, %10 : i1
    %12 = arith.andi %11, %8 : i1
    %13 = arith.addi %7, %6 : i32
    %14 = arith.select %12, %13, %7 : i32
    %c0_i32_6 = arith.constant 0 : i32
    %15 = arith.cmpi eq, %14, %c0_i32_6 : i32
    %16 = arith.extui %15 : i1 to i32
    %c0_i32_7 = arith.constant 0 : i32
    %17 = arith.cmpi ne, %16, %c0_i32_7 : i32
    scf.if %17 {
      %c0 = arith.constant 0 : index
      %c0_16 = arith.constant 0 : index
      %31 = vector.load %arg7[%c0, %c0_16] : memref<16x128xbf16, #tpu.memory_space<vmem>>, vector<16x128xbf16>
      %c0_17 = arith.constant 0 : index
      %c0_18 = arith.constant 0 : index
      %32 = vector.load %arg2[%c0_17, %c0_18] : memref<16x16xbf16, #tpu.memory_space<vmem>>, vector<16x16xbf16>
      %cst = arith.constant dense<0.000000e+00> : vector<16x128xf32>
      %33 = tpu.matmul %32, %31, %cst {dimension_numbers = #tpu.dot_dimension_numbers<[1], [0], [0], [1], [0, 0, 1, 1], [], []>} : vector<16x16xbf16>, vector<16x128xbf16>, vector<16x128xf32> -> vector<16x128xf32>
      %34 = arith.truncf %33 : vector<16x128xf32> to vector<16x128xbf16>
      %35 = tpu.concatenate %34, %31 in 1 : vector<16x128xbf16>, vector<16x128xbf16> -> vector<16x256xbf16>
      %c0_19 = arith.constant 0 : index
      %c0_20 = arith.constant 0 : index
      %c0_21 = arith.constant 0 : index
      %36 = vector.load %arg4[%c0_19, %c0_20, %c0_21] : memref<1x256x128xbf16, #tpu.memory_space<vmem>>, vector<1x256x128xbf16>
      %37 = vector.shape_cast %36 : vector<1x256x128xbf16> to vector<256x128xbf16>
      %cst_22 = arith.constant dense<0.000000e+00> : vector<16x128xf32>
      %38 = tpu.matmul %35, %37, %cst_22 {dimension_numbers = #tpu.dot_dimension_numbers<[1], [0], [0], [1], [0, 0, 1, 1], [], []>} : vector<16x256xbf16>, vector<256x128xbf16>, vector<16x128xf32> -> vector<16x128xf32>
      %c0_23 = arith.constant 0 : index
      %c0_24 = arith.constant 0 : index
      %c0_25 = arith.constant 0 : index
      %39 = vector.load %arg5[%c0_23, %c0_24, %c0_25] : memref<1x1x128xf32, #tpu.memory_space<vmem>>, vector<1x1x128xf32>
      %40 = vector.shape_cast %39 : vector<1x1x128xf32> to vector<1x128xf32>
      %41 = vector.broadcast %40 : vector<1x128xf32> to vector<16x128xf32>
      %42 = arith.addf %38, %41 : vector<16x128xf32>
      %c2_i32_26 = arith.constant 2 : i32
      %43 = arith.cmpi eq, %arg0, %c2_i32_26 : i32
      %true = arith.constant true
      %44 = arith.xori %43, %true : i1
      %45 = arith.extui %44 : i1 to i32
      %c0_i32_27 = arith.constant 0 : i32
      %46 = arith.cmpi ne, %45, %c0_i32_27 : i32
      scf.if %46 {
        %49 = math.tanh %42 : vector<16x128xf32>
        %50 = arith.truncf %49 : vector<16x128xf32> to vector<16x128xbf16>
        %c0_29 = arith.constant 0 : index
        %c0_30 = arith.constant 0 : index
        %51 = vector.load %arg8[%c0_29, %c0_30] : memref<16x128xbf16, #tpu.memory_space<vmem>>, vector<16x128xbf16>
        tpu.vector_store %arg8[%c0_29, %c0_30], %50 {strides = array<i32>} : memref<16x128xbf16, #tpu.memory_space<vmem>>, vector<16x128xbf16>,
      } else {
      }
      %47 = arith.extui %43 : i1 to i32
      %c0_i32_28 = arith.constant 0 : i32
      %48 = arith.cmpi ne, %47, %c0_i32_28 : i32
      scf.if %48 {
        %cst_29 = arith.constant 0.000000e+00 : f32
        %49 = vector.broadcast %cst_29 : f32 to vector<16x128xf32>
        %50 = arith.subf %49, %42 : vector<16x128xf32>
        %51 = math.exp %50 : vector<16x128xf32>
        %cst_30 = arith.constant 1.000000e+00 : f32
        %52 = vector.broadcast %cst_30 : f32 to vector<16x128xf32>
        %53 = arith.addf %52, %51 : vector<16x128xf32>
        %54 = tpu.reciprocal %53 {approx = true} : vector<16x128xf32> -> vector<16x128xf32>
        %c0_31 = arith.constant 0 : index
        %c0_32 = arith.constant 0 : index
        %55 = vector.load %arg6[%c0_31, %c0_32] : memref<16x128xf32, #tpu.memory_space<vmem>>, vector<16x128xf32>
        tpu.vector_store %arg6[%c0_31, %c0_32], %54 {strides = array<i32>} : memref<16x128xf32, #tpu.memory_space<vmem>>, vector<16x128xf32>,
      } else {
      }
    } else {
    }
    %c2_i32_8 = arith.constant 2 : i32
    %c0_i32_9 = arith.constant 0 : i32
    %18 = arith.cmpi eq, %c2_i32_8, %c0_i32_9 : i32
    %c1_i32_10 = arith.constant 1 : i32
    %19 = arith.select %18, %c1_i32_10, %c2_i32_8 : i32
    %20 = arith.remsi %arg0, %19 : i32
    %c0_i32_11 = arith.constant 0 : i32
    %21 = arith.cmpi ne, %20, %c0_i32_11 : i32
    %c0_i32_12 = arith.constant 0 : i32
    %22 = arith.cmpi slt, %20, %c0_i32_12 : i32
    %c0_i32_13 = arith.constant 0 : i32
    %23 = arith.cmpi slt, %19, %c0_i32_13 : i32
    %24 = arith.xori %22, %23 : i1
    %25 = arith.andi %24, %21 : i1
    %26 = arith.addi %20, %19 : i32
    %27 = arith.select %25, %26, %20 : i32
    %c1_i32_14 = arith.constant 1 : i32
    %28 = arith.cmpi eq, %27, %c1_i32_14 : i32
    %29 = arith.extui %28 : i1 to i32
    %c0_i32_15 = arith.constant 0 : i32
    %30 = arith.cmpi ne, %29, %c0_i32_15 : i32
    scf.if %30 {
      %c0 = arith.constant 0 : index
      %c0_16 = arith.constant 0 : index
      %31 = vector.load %arg8[%c0, %c0_16] : memref<16x128xbf16, #tpu.memory_space<vmem>>, vector<16x128xbf16>
      %c0_17 = arith.constant 0 : index
      %c0_18 = arith.constant 0 : index
      %32 = vector.load %arg2[%c0_17, %c0_18] : memref<16x16xbf16, #tpu.memory_space<vmem>>, vector<16x16xbf16>
      %cst = arith.constant dense<0.000000e+00> : vector<16x128xf32>
      %33 = tpu.matmul %32, %31, %cst {dimension_numbers = #tpu.dot_dimension_numbers<[1], [0], [0], [1], [0, 0, 1, 1], [], []>} : vector<16x16xbf16>, vector<16x128xbf16>, vector<16x128xf32> -> vector<16x128xf32>
      %34 = arith.truncf %33 : vector<16x128xf32> to vector<16x128xbf16>
      %35 = tpu.concatenate %34, %31 in 1 : vector<16x128xbf16>, vector<16x128xbf16> -> vector<16x256xbf16>
      %c0_19 = arith.constant 0 : index
      %c0_20 = arith.constant 0 : index
      %c0_21 = arith.constant 0 : index
      %36 = vector.load %arg4[%c0_19, %c0_20, %c0_21] : memref<1x256x128xbf16, #tpu.memory_space<vmem>>, vector<1x256x128xbf16>
      %37 = vector.shape_cast %36 : vector<1x256x128xbf16> to vector<256x128xbf16>
      %cst_22 = arith.constant dense<0.000000e+00> : vector<16x128xf32>
      %38 = tpu.matmul %35, %37, %cst_22 {dimension_numbers = #tpu.dot_dimension_numbers<[1], [0], [0], [1], [0, 0, 1, 1], [], []>} : vector<16x256xbf16>, vector<256x128xbf16>, vector<16x128xf32> -> vector<16x128xf32>
      %c0_23 = arith.constant 0 : index
      %c0_24 = arith.constant 0 : index
      %c0_25 = arith.constant 0 : index
      %39 = vector.load %arg5[%c0_23, %c0_24, %c0_25] : memref<1x1x128xf32, #tpu.memory_space<vmem>>, vector<1x1x128xf32>
      %40 = vector.shape_cast %39 : vector<1x1x128xf32> to vector<1x128xf32>
      %41 = vector.broadcast %40 : vector<1x128xf32> to vector<16x128xf32>
      %42 = arith.addf %38, %41 : vector<16x128xf32>
      %c2_i32_26 = arith.constant 2 : i32
      %43 = arith.cmpi eq, %arg0, %c2_i32_26 : i32
      %true = arith.constant true
      %44 = arith.xori %43, %true : i1
      %45 = arith.extui %44 : i1 to i32
      %c0_i32_27 = arith.constant 0 : i32
      %46 = arith.cmpi ne, %45, %c0_i32_27 : i32
      scf.if %46 {
        %49 = math.tanh %42 : vector<16x128xf32>
        %50 = arith.truncf %49 : vector<16x128xf32> to vector<16x128xbf16>
        %c0_29 = arith.constant 0 : index
        %c0_30 = arith.constant 0 : index
        %51 = vector.load %arg7[%c0_29, %c0_30] : memref<16x128xbf16, #tpu.memory_space<vmem>>, vector<16x128xbf16>
        tpu.vector_store %arg7[%c0_29, %c0_30], %50 {strides = array<i32>} : memref<16x128xbf16, #tpu.memory_space<vmem>>, vector<16x128xbf16>,
      } else {
      }
      %47 = arith.extui %43 : i1 to i32
      %c0_i32_28 = arith.constant 0 : i32
      %48 = arith.cmpi ne, %47, %c0_i32_28 : i32
      scf.if %48 {
        %cst_29 = arith.constant 0.000000e+00 : f32
        %49 = vector.broadcast %cst_29 : f32 to vector<16x128xf32>
        %50 = arith.subf %49, %42 : vector<16x128xf32>
        %51 = math.exp %50 : vector<16x128xf32>
        %cst_30 = arith.constant 1.000000e+00 : f32
        %52 = vector.broadcast %cst_30 : f32 to vector<16x128xf32>
        %53 = arith.addf %52, %51 : vector<16x128xf32>
        %54 = tpu.reciprocal %53 {approx = true} : vector<16x128xf32> -> vector<16x128xf32>
        %c0_31 = arith.constant 0 : index
        %c0_32 = arith.constant 0 : index
        %55 = vector.load %arg6[%c0_31, %c0_32] : memref<16x128xf32, #tpu.memory_space<vmem>>, vector<16x128xf32>
        tpu.vector_store %arg6[%c0_31, %c0_32], %54 {strides = array<i32>} : memref<16x128xf32, #tpu.memory_space<vmem>>, vector<16x128xf32>,
      } else {
      }
    } else {
    }
    return
  }
  func.func @transform_0(%arg0: i32, %arg1: i32) -> (i32, i32) {
    %c0_i32 = arith.constant 0 : i32
    %c0_i32_0 = arith.constant 0 : i32
    return %arg1, %c0_i32 : i32, i32
  }
  func.func @transform_1(%arg0: i32, %arg1: i32) -> (i32, i32) {
    %c0_i32 = arith.constant 0 : i32
    %c0_i32_0 = arith.constant 0 : i32
    %c0_i32_1 = arith.constant 0 : i32
    return %c0_i32, %c0_i32_0 : i32, i32
  }
  func.func @transform_2(%arg0: i32, %arg1: i32) -> (i32, i32, i32) {
    %c0_i32 = arith.constant 0 : i32
    %c0_i32_0 = arith.constant 0 : i32
    %c0_i32_1 = arith.constant 0 : i32
    return %arg0, %c0_i32, %c0_i32_0 : i32, i32, i32
  }
  func.func @transform_3(%arg0: i32, %arg1: i32) -> (i32, i32, i32) {
    %c0_i32 = arith.constant 0 : i32
    %c0_i32_0 = arith.constant 0 : i32
    %c0_i32_1 = arith.constant 0 : i32
    return %arg0, %c0_i32, %c0_i32_0 : i32, i32, i32
  }
  func.func @transform_4(%arg0: i32, %arg1: i32) -> (i32, i32) {
    %c2_i32 = arith.constant 2 : i32
    %0 = arith.cmpi eq, %arg0, %c2_i32 : i32
    %c0_i32 = arith.constant 0 : i32
    %1 = arith.select %0, %arg1, %c0_i32 : i32
    %c0_i32_0 = arith.constant 0 : i32
    %c0_i32_1 = arith.constant 0 : i32
    return %1, %c0_i32_0 : i32, i32
  }
}

</mosaic_0001>

<llo_original>
// kernel: tpu_custom_call.1
$region0: #{tpu_custom_call.1}
  #allocation0 [shape = 'u32[]', space=smem, size = 0x4, offset = 0x4, fixed_abs, tag = 'smem constant byte address 0x4 - core index']
  #allocation1 [shape = 'u32[72,128]{1,0:T(1,128)}', space=vmem, size = 0x9000, scoped, tag = 'internal scratch']
  #allocation2 [shape = 'bf16[16,128]{1,0:T(8,128)(2,1)}', space=vmem, size = 0x1000, scoped, tag = 'scratch operand']
  #allocation3 [shape = 'bf16[16,128]{1,0:T(8,128)(2,1)}', space=vmem, size = 0x1000, scoped, tag = 'scratch operand']
  %s0 = inlined_call_operand.hbm [shape: bf16[16,16], index: 0, kind: input, shape index: {}]
  %s1 = inlined_call_operand.hbm [shape: bf16[16,128], index: 1, kind: input, shape index: {}]
  %s2 = inlined_call_operand.hbm [shape: bf16[3,256,128], index: 2, kind: input, shape index: {}]
  %s3 = inlined_call_operand.hbm [shape: f32[3,1,128], index: 3, kind: input, shape index: {}]
  %s4 = inlined_call_operand.hbm [shape: f32[16,128], index: 4, kind: output, shape index: {}]
  %s5 = sld [smem:[#allocation0]]
  $region93: #{tpu_custom_call.1} parent=0
    _
  %s7 = ssub.s32 1, %s5
  %s8 = scalar_select 0, %s7, %s5
  $region1: #{tpu_custom_call.1} parent=0
    #allocation4 [shape = 'u8[4096]{0}', space=vmem, size = 0x1000, scoped, tag = 'input window, operand 0, single buffered']
    #allocation5 [shape = 's32[2]{0}', space=sflag, size = 0x8, scoped, tag = 'scoped memory for tpu_custom_call.1']
    #allocation6 [shape = 's32[2]{0}', space=sflag, size = 0x8, scoped, tag = 'scoped memory for tpu_custom_call.1']
    #allocation7 [shape = 'u8[4096]{0}', space=vmem, size = 0x1000, scoped, tag = 'input window, operand 1, single buffered']
    #allocation8 [shape = 's32[1]{0}', space=sflag, size = 0x4, scoped, tag = 'scoped memory for tpu_custom_call.1']
    #allocation9 [shape = 'u8[131072]{0}', space=vmem, size = 0x20000, scoped, tag = 'input window, operand 2']
    #allocation10 [shape = 'u8[1024]{0}', space=vmem, size = 0x400, scoped, tag = 'input window, operand 3']
    #allocation11 [shape = 'u8[16384]{0}', space=vmem, size = 0x4000, scoped, tag = 'output window, operand 0']
    %9 = vsyncpa [#allocation5], 0
    %10 = vsyncpa [#allocation8], 0
    %11 = vsyncpa [#allocation6], 0
    %s12 = scalar_lea.sflag [#allocation6], 1
    %13 = vsyncpa %s12, 0
    loop: start=0, step=1, limit=5
    $region2: #{tpu_custom_call.1} parent=1 // loop_pre_header
      _
    $region3: #{tpu_custom_call.1} parent=1 // loop_header
      %s15 = sphi 0, %s19
      %p16 = scmp.ge.s32.totalorder %s15, 5
      %s22 = sphi 0, %s34
      %s23 = sphi 0, %s30
      %s24 = sphi 0, %s22
      %s25 = sphi 0, %s23
      %s26 = sphi 0, %s24
      %s27 = sphi 0, %s25
      %s37 = sphi 0, %s39
      %s40 = sphi 0, %s37
      %s41 = sphi 0, %s40
      %s57 = sphi 0, %s41
      %s61 = sphi 0, %s61
      %s63 = sphi 0, %s61
      %s64 = sphi 0, %s63
      %s78 = sphi 0, %s64
      %s84 = sphi 0, %s86
      %s87 = sphi 0, %s84
      %s88 = sphi 0, %s87
      %s104 = sphi 0, %s88
      %s110 = sphi 0, %s112
      %s113 = sphi 0, %s110
      %s114 = sphi 0, %s113
      %s130 = sphi 0, %s114
      %s140 = sphi 0, %s142
      %s143 = sphi 0, %s140
      %s144 = sphi 0, %s143
      %s160 = sphi 0, %s144
    $region4: #{tpu_custom_call.1} parent=1 // loop_header_branch
      %18 = sbr.rel (%p16) target = $region8
    $region5: #{tpu_custom_call.1} parent=1 // loop_body
      %s20 = ssub.s32 %s15, 1
      %s21 = ssub.s32 %s15, 2
      %s28 = sadd.s32 1, %s23
      %p29 = scmp.ge.s32.totalorder %s28, 1
      %s30 = scalar_select %p29, 0, %s28
      %s31 = sadd.s32 1, %s22
      %s32 = scalar_select %p29, %s31, %s22
      %p33 = scmp.ge.s32.totalorder %s32, 3
      %s34 = scalar_select %p33, 0, %s32
      %s35 = ssub.s32 %s23, %s30
      %p36 = scmp.eq.s32.totalorder %s35, 0
      %s38 = sadd.s32 %s37, 1
      %s39 = scalar_select %p36, %s37, %s38
      %p42 = pneg %p36
      %p43 = scmp.eq.s32.totalorder %s15, 2
      %p44 = por %p42, %p43
      %p45 = scmp.ne.s32.totalorder %s37, %s40
      %p46 = scmp.eq.s32.totalorder %s15, 0
      %p47 = por %p45, %p46
      %p48 = scmp.ne.s32.totalorder %s37, %s40
      %p49 = scmp.eq.s32.totalorder %s20, 2
      %p50 = por %p48, %p49
      %p51 = scmp.ne.s32.totalorder %s40, %s41
      %p52 = scmp.eq.s32.totalorder %s20, 0
      %p53 = por %p51, %p52
      %p54 = scmp.ne.s32.totalorder %s40, %s41
      %p55 = scmp.eq.s32.totalorder %s21, 2
      %p56 = por %p54, %p55
      %p58 = scmp.ne.s32.totalorder %s41, %s57
      %p59 = scmp.eq.s32.totalorder %s21, 0
      %p60 = por %p58, %p59
      %s62 = sadd.s32 %s61, 1
      %p65 = scmp.eq.s32.totalorder %s15, 2
      %p66 = scmp.ne.s32.totalorder %s61, %s63
      %p67 = scmp.eq.s32.totalorder %s15, 0
      %p68 = por %p66, %p67
      %p69 = scmp.ne.s32.totalorder %s61, %s63
      %p70 = scmp.eq.s32.totalorder %s20, 2
      %p71 = por %p69, %p70
      %p72 = scmp.ne.s32.totalorder %s63, %s64
      %p73 = scmp.eq.s32.totalorder %s20, 0
      %p74 = por %p72, %p73
      %p75 = scmp.ne.s32.totalorder %s63, %s64
      %p76 = scmp.eq.s32.totalorder %s21, 2
      %p77 = por %p75, %p76
      %p79 = scmp.ne.s32.totalorder %s64, %s78
      %p80 = scmp.eq.s32.totalorder %s21, 0
      %p81 = por %p79, %p80
      %s82 = ssub.s32 %s22, %s34
      %p83 = scmp.eq.s32.totalorder %s82, 0
      %s85 = sadd.s32 %s84, 1
      %s86 = scalar_select %p83, %s84, %s85
      %p89 = pneg %p83
      %p90 = scmp.eq.s32.totalorder %s15, 2
      %p91 = por %p89, %p90
      %p92 = scmp.ne.s32.totalorder %s84, %s87
      %p93 = scmp.eq.s32.totalorder %s15, 0
      %p94 = por %p92, %p93
      %p95 = scmp.ne.s32.totalorder %s84, %s87
      %p96 = scmp.eq.s32.totalorder %s20, 2
      %p97 = por %p95, %p96
      %p98 = scmp.ne.s32.totalorder %s87, %s88
      %p99 = scmp.eq.s32.totalorder %s20, 0
      %p100 = por %p98, %p99
      %p101 = scmp.ne.s32.totalorder %s87, %s88
      %p102 = scmp.eq.s32.totalorder %s21, 2
      %p103 = por %p101, %p102
      %p105 = scmp.ne.s32.totalorder %s88, %s104
      %p106 = scmp.eq.s32.totalorder %s21, 0
      %p107 = por %p105, %p106
      %s108 = ssub.s32 %s22, %s34
      %p109 = scmp.eq.s32.totalorder %s108, 0
      %s111 = sadd.s32 %s110, 1
      %s112 = scalar_select %p109, %s110, %s111
      %p115 = pneg %p109
      %p116 = scmp.eq.s32.totalorder %s15, 2
      %p117 = por %p115, %p116
      %p118 = scmp.ne.s32.totalorder %s110, %s113
      %p119 = scmp.eq.s32.totalorder %s15, 0
      %p120 = por %p118, %p119
      %p121 = scmp.ne.s32.totalorder %s110, %s113
      %p122 = scmp.eq.s32.totalorder %s20, 2
      %p123 = por %p121, %p122
      %p124 = scmp.ne.s32.totalorder %s113, %s114
      %p125 = scmp.eq.s32.totalorder %s20, 0
      %p126 = por %p124, %p125
      %p127 = scmp.ne.s32.totalorder %s113, %s114
      %p128 = scmp.eq.s32.totalorder %s21, 2
      %p129 = por %p127, %p128
      %p131 = scmp.ne.s32.totalorder %s114, %s130
      %p132 = scmp.eq.s32.totalorder %s21, 0
      %p133 = por %p131, %p132
      %p134 = scmp.eq.s32.totalorder %s22, 2
      %s135 = scalar_select %p134, %s23, 0
      %p136 = scmp.eq.s32.totalorder %s34, 2
      %s137 = scalar_select %p136, %s30, 0
      %s138 = ssub.s32 %s135, %s137
      %p139 = scmp.eq.s32.totalorder %s138, 0
      %s141 = sadd.s32 %s140, 1
      %s142 = scalar_select %p139, %s140, %s141
      %p145 = pneg %p139
      %p146 = scmp.eq.s32.totalorder %s15, 2
      %p147 = por %p145, %p146
      %p148 = scmp.ne.s32.totalorder %s140, %s143
      %p149 = scmp.eq.s32.totalorder %s15, 0
      %p150 = por %p148, %p149
      %p151 = scmp.ne.s32.totalorder %s140, %s143
      %p152 = scmp.eq.s32.totalorder %s20, 2
      %p153 = por %p151, %p152
      %p154 = scmp.ne.s32.totalorder %s143, %s144
      %p155 = scmp.eq.s32.totalorder %s20, 0
      %p156 = por %p154, %p155
      %p157 = scmp.ne.s32.totalorder %s143, %s144
      %p158 = scmp.eq.s32.totalorder %s21, 2
      %p159 = por %p157, %p158
      %p161 = scmp.ne.s32.totalorder %s144, %s160
      %p162 = scmp.eq.s32.totalorder %s21, 0
      %p163 = por %p161, %p162
      %p164 = scmp.le.s32.totalorder 1, %s15
      %p165 = scmp.lt.s32.totalorder %s15, 4
      %p166 = pnand %p164, %p165
      %p167 = pneg %p166
      // Predicated region
      $region9: #{tpu_custom_call.1} parent=5 // pred_check
        _
      $region10: #{tpu_custom_call.1} parent=5 // pred_check_branch
        %169 = sbr.rel (%p166) target = $region12
      $region11: #{tpu_custom_call.1} parent=5 // pred_region
        %s170 = ssub.s32 %s15, 1
        // Predicated region
        $region13: #{tpu_custom_call.1} parent=11 // pred_check
          %p171 = pneg %p53
        $region14: #{tpu_custom_call.1} parent=11 // pred_check_branch
          %173 = sbr.rel (%p171) target = $region16
        $region15: #{tpu_custom_call.1} parent=11 // pred_region
          %s174 = smul.u32 2, %s25
          %176 = vsyncadd [#allocation5], 0
          %s177 = smul.addr %s174, 4
          %s178 = scalar_lea.hbm %s0, %s177
          %s179 = sshll.u32 %s178, 4
          %s180 = int_to_ptr.hbm [resolvable:$true] %s179
          %s181 = sshll.u32 [#allocation4], 4
          %s182 = int_to_ptr.vmem [resolvable:$true] %s181
          %187 = dma.hbm_to_vmem [thread:$0]  %s180, 128, %s182, [#allocation5], 64, 64, 4
        $region16: #{tpu_custom_call.1} parent=11 // pred_fallthru
          _
        // Predicated region
        $region17: #{tpu_custom_call.1} parent=11 // pred_check
          %p188 = pneg %p74
        $region18: #{tpu_custom_call.1} parent=11 // pred_check_branch
          %190 = sbr.rel (%p188) target = $region20
        $region19: #{tpu_custom_call.1} parent=11 // pred_region
          %192 = vsyncadd [#allocation8], 0
          %s193 = sshll.u32 %s1, 4
          %s194 = int_to_ptr.hbm [resolvable:$true] %s193
          %s195 = sshll.u32 [#allocation7], 4
          %s196 = int_to_ptr.vmem [resolvable:$true] %s195
          %201 = dma.hbm_to_vmem [thread:$0]  %s194, 128, %s196, [#allocation8], 64, 64, 4
        $region20: #{tpu_custom_call.1} parent=11 // pred_fallthru
          _
      $region12: #{tpu_custom_call.1} parent=5 // pred_fallthru
        _
      %p202 = scmp.lt.s32.totalorder %s15, 3
      // Predicated region
      $region21: #{tpu_custom_call.1} parent=5 // pred_check
        %p203 = pneg %p202
      $region22: #{tpu_custom_call.1} parent=5 // pred_check_branch
        %205 = sbr.rel (%p203) target = $region24
      $region23: #{tpu_custom_call.1} parent=5 // pred_region
        // Predicated region
        $region25: #{tpu_custom_call.1} parent=23 // pred_check
          %p206 = pneg %p94
        $region26: #{tpu_custom_call.1} parent=23 // pred_check_branch
          %208 = sbr.rel (%p206) target = $region28
        $region27: #{tpu_custom_call.1} parent=23 // pred_region
          %s209 = sand.u32 %s15, 1
          %s210 = scalar_lea.sflag [#allocation5], %s209
          %s211 = sand.u32 %s84, 1
          %s212 = smul.addr %s211, 128
          %s213 = scalar_lea.vmem [#allocation9], %s212
          %215 = vsyncadd %s210, 0
          %s216 = smul.addr %s22, 32
          %s217 = smul.addr %s216, 4
          %s218 = scalar_lea.hbm %s2, %s217
          %s219 = sshll.u32 %s218, 4
          %s220 = int_to_ptr.hbm [resolvable:$true] %s219
          %s221 = sshll.u32 %s213, 4
          %s222 = int_to_ptr.vmem [resolvable:$true] %s221
          %227 = dma.hbm_to_vmem [thread:$0]  %s220, 2048, %s222, %s210, 64, 64, 4
        $region28: #{tpu_custom_call.1} parent=23 // pred_fallthru
          _
        // Predicated region
        $region29: #{tpu_custom_call.1} parent=23 // pred_check
          %p228 = pneg %p120
        $region30: #{tpu_custom_call.1} parent=23 // pred_check_branch
          %230 = sbr.rel (%p228) target = $region32
        $region31: #{tpu_custom_call.1} parent=23 // pred_region
          %s231 = sand.u32 %s15, 1
          %s232 = scalar_lea.sflag [#allocation5], %s231
          %s233 = sand.u32 %s110, 1
          %s234 = scalar_lea.vmem [#allocation10], %s233
          %236 = vsyncadd %s232, 0
          %s237 = scalar_lea.hbm %s3, %s22
          %s239 = sshll.u32 %s237, 4
          %s240 = int_to_ptr.hbm [resolvable:$true] %s239
          %s241 = sshll.u32 %s234, 4
          %s242 = int_to_ptr.vmem [resolvable:$true] %s241
          %244 = dma.hbm_to_vmem [thread:$0]  %s240, 16, %s242, %s232
        $region32: #{tpu_custom_call.1} parent=23 // pred_fallthru
          _
      $region24: #{tpu_custom_call.1} parent=5 // pred_fallthru
        _
      %p245 = scmp.le.s32.totalorder 1, %s15
      %p246 = scmp.lt.s32.totalorder %s15, 4
      %p247 = pnand %p245, %p246
      %p248 = pneg %p247
      // Predicated region
      $region33: #{tpu_custom_call.1} parent=5 // pred_check
        _
      $region34: #{tpu_custom_call.1} parent=5 // pred_check_branch
        %250 = sbr.rel (%p247) target = $region36
      $region35: #{tpu_custom_call.1} parent=5 // pred_region
        %s251 = ssub.s32 %s15, 1
        // Predicated region
        $region37: #{tpu_custom_call.1} parent=35 // pred_check
          %p252 = pneg %p53
        $region38: #{tpu_custom_call.1} parent=35 // pred_check_branch
          %254 = sbr.rel (%p252) target = $region40
        $region39: #{tpu_custom_call.1} parent=35 // pred_region
          %256 = dma.done [#allocation5], 128
        $region40: #{tpu_custom_call.1} parent=35 // pred_fallthru
          _
        // Predicated region
        $region41: #{tpu_custom_call.1} parent=35 // pred_check
          %p257 = pneg %p74
        $region42: #{tpu_custom_call.1} parent=35 // pred_check_branch
          %259 = sbr.rel (%p257) target = $region44
        $region43: #{tpu_custom_call.1} parent=35 // pred_region
          %261 = dma.done [#allocation8], 128
        $region44: #{tpu_custom_call.1} parent=35 // pred_fallthru
          _
        %s262 = sand.u32 %s20, 1
        %s263 = scalar_lea.sflag [#allocation5], %s262
        %s264 = sand.u32 %s87, 1
        %s265 = smul.addr %s264, 128
        %s266 = scalar_lea.vmem [#allocation9], %s265
        // Predicated region
        $region45: #{tpu_custom_call.1} parent=35 // pred_check
          %p267 = pneg %p100
        $region46: #{tpu_custom_call.1} parent=35 // pred_check_branch
          %269 = sbr.rel (%p267) target = $region48
        $region47: #{tpu_custom_call.1} parent=35 // pred_region
          %271 = dma.done %s263, 2048
        $region48: #{tpu_custom_call.1} parent=35 // pred_fallthru
          _
        %s272 = sand.u32 %s20, 1
        %s273 = scalar_lea.sflag [#allocation5], %s272
        %s274 = sand.u32 %s113, 1
        %s275 = scalar_lea.vmem [#allocation10], %s274
        // Predicated region
        $region49: #{tpu_custom_call.1} parent=35 // pred_check
          %p276 = pneg %p126
        $region50: #{tpu_custom_call.1} parent=35 // pred_check_branch
          %278 = sbr.rel (%p276) target = $region52
        $region51: #{tpu_custom_call.1} parent=35 // pred_region
          %280 = dma.done %s273, 16
        $region52: #{tpu_custom_call.1} parent=35 // pred_fallthru
          _
        %p281 = pneg %p53
        %p282 = pneg %p50
        %p283 = pneg %p74
        %p284 = pneg %p71
        %s285 = sand.u32 %s20, 1
        %s286 = scalar_lea.sflag [#allocation5], %s285
        %s287 = sand.u32 %s87, 1
        %s288 = smul.addr %s287, 128
        %s289 = scalar_lea.vmem [#allocation9], %s288
        %p290 = pneg %p100
        %p291 = pneg %p97
        %s292 = sand.u32 %s20, 1
        %s293 = scalar_lea.sflag [#allocation5], %s292
        %s294 = sand.u32 %s113, 1
        %s295 = scalar_lea.vmem [#allocation10], %s294
        %p296 = pneg %p126
        %p297 = pneg %p123
        %p298 = pneg %p156
        %p299 = pneg %p153
        %s300 = sand.u32 %s143, 1
        %s301 = scalar_lea.sflag [#allocation6], %s300
        %s302 = sand.u32 %s143, 1
        %s303 = smul.addr %s302, 16
        %s304 = scalar_lea.vmem [#allocation11], %s303
        %s305 = smul.u32 2, %s25
        %p306 = scmp.eq.s32.totalorder %s24, 2
        %s307 = scalar_select %p306, %s25, 0
        %s308 = smul.u32 2, %s307
        %p310 = scmp.eq.s32.totalorder %s24, 0
        %p311 = scmp.eq.s32.totalorder %s25, 0
        %p312 = pnand %p310, %p311
        %p313 = pneg %p312
        // Predicated region
        $region53: #{tpu_custom_call.1} parent=35 // pred_check
          _
        $region54: #{tpu_custom_call.1} parent=35 // pred_check_branch
          %315 = sbr.rel (%p312) target = $region56
        $region55: #{tpu_custom_call.1} parent=35 // pred_region
          %v316 = vld [vmem:[#allocation7] sm:$0xf]
          %v317 = vld [vmem:[#allocation7 + $0x4] sm:$0xf]
          %318 = vst [vmem:[#allocation2] sm:$0xf] %v316
          %319 = vst [vmem:[#allocation2 + $0x4] sm:$0xf] %v317
        $region56: #{tpu_custom_call.1} parent=35 // pred_fallthru
          _
        %p320 = scmp.lt.s32.totalorder %s24, 0
        %s321 = ssub.s32 0, %s24
        %s322 = scalar_select %p320, %s321, %s24
        %s323 = sand.u32 %s322, 1
        %s324 = ssub.s32 0, %s323
        %s325 = scalar_select %p320, %s324, %s323
        %p326 = scmp.ne.s32.totalorder %s325, 0
        %p327 = scmp.lt.s32.totalorder %s325, 0
        %p328 = pnand %p327, %p326
        %p329 = pneg %p328
        %s330 = sadd.s32 %s325, 2
        %s331 = scalar_select %p329, %s330, %s325
        %p332 = scmp.eq.s32.totalorder %s331, 0
        // Predicated region
        $region57: #{tpu_custom_call.1} parent=35 // pred_check
          %p333 = pneg %p332
        $region58: #{tpu_custom_call.1} parent=35 // pred_check_branch
          %335 = sbr.rel (%p333) target = $region60
        $region59: #{tpu_custom_call.1} parent=35 // pred_region
          %v336 = vld [vmem:[#allocation2] sm:$0xf]
          %v337 = vld [vmem:[#allocation2 + $0x4] sm:$0xf]
          %v338 = vld [vmem:[#allocation4] sm:$0xf]
          %v339 = vld [vmem:[#allocation4 + $0x4] sm:$0xf]
          %v342 = vunpack.c.l.b16 %v338
          %v343 = vunpack.c.l.b16 %v339
          %v344 = vpack.c.b16 %v343, %v342
          %v347 = vunpack.c.l.b16 %v336
          %v348 = vunpack.c.l.b16 %v337
          %v349 = vpack.c.b16 %v348, %v347
          %vm351 = vcmask 130048
          %v353 = vsel %vm351, %v344, 0
          %355 = vmatpush.bf16.msra.mxu0 0
          %356 = vmatpush.bf16.msra.mxu0 0
          %357 = vmatpush.bf16.msra.mxu0 0
          %358 = vmatpush.bf16.msra.mxu0 0
          %359 = vmatpush.bf16.msra.mxu0 0
          %360 = vmatpush.bf16.msra.mxu0 0
          %361 = vmatpush.bf16.msra.mxu0 0
          %362 = vmatpush.bf16.msra.mxu0 %v349
          %363 = vmatmul.bf16.gmra.mxu0 %v353
          %v364 = vpop.f32.mrf.mxu0
          %v365 = vadd.f32 0.0, %v364
          %v366 = vpop.f32.mrf.mxu0
          %v367 = vadd.f32 0.0, %v366
          %368 = vdwg.mxu0
          %v369 = vpack.c.bf16 %v365, %v365
          %v370 = vpack.c.bf16 %v367, %v367
          %v373 = vunpack.c.l.b16 %v369
          %v374 = vunpack.c.l.b16 %v370
          %v375 = vpack.c.b16 %v374, %v373
          %v377 = vld [vmem:[%s266] sm:$0xf]
          %v378 = vld [vmem:[%s266 + $0x4] sm:$0xf]
          %v379 = vld [vmem:[%s266 + $0x8] sm:$0xf]
          %v380 = vld [vmem:[%s266 + $0xc] sm:$0xf]
          %v381 = vld [vmem:[%s266 + $0x10] sm:$0xf]
          %v382 = vld [vmem:[%s266 + $0x14] sm:$0xf]
          %v383 = vld [vmem:[%s266 + $0x18] sm:$0xf]
          %v384 = vld [vmem:[%s266 + $0x1c] sm:$0xf]
          %v385 = vld [vmem:[%s266 + $0x20] sm:$0xf]
          %v386 = vld [vmem:[%s266 + $0x24] sm:$0xf]
          %v387 = vld [vmem:[%s266 + $0x28] sm:$0xf]
          %v388 = vld [vmem:[%s266 + $0x2c] sm:$0xf]
          %v389 = vld [vmem:[%s266 + $0x30] sm:$0xf]
          %v390 = vld [vmem:[%s266 + $0x34] sm:$0xf]
          %v391 = vld [vmem:[%s266 + $0x38] sm:$0xf]
          %v392 = vld [vmem:[%s266 + $0x3c] sm:$0xf]
          %v393 = vld [vmem:[%s266 + $0x40] sm:$0xf]
          %v394 = vld [vmem:[%s266 + $0x44] sm:$0xf]
          %v395 = vld [vmem:[%s266 + $0x48] sm:$0xf]
          %v396 = vld [vmem:[%s266 + $0x4c] sm:$0xf]
          %v397 = vld [vmem:[%s266 + $0x50] sm:$0xf]
          %v398 = vld [vmem:[%s266 + $0x54] sm:$0xf]
          %v399 = vld [vmem:[%s266 + $0x58] sm:$0xf]
          %v400 = vld [vmem:[%s266 + $0x5c] sm:$0xf]
          %v401 = vld [vmem:[%s266 + $0x60] sm:$0xf]
          %v402 = vld [vmem:[%s266 + $0x64] sm:$0xf]
          %v403 = vld [vmem:[%s266 + $0x68] sm:$0xf]
          %v404 = vld [vmem:[%s266 + $0x6c] sm:$0xf]
          %v405 = vld [vmem:[%s266 + $0x70] sm:$0xf]
          %v406 = vld [vmem:[%s266 + $0x74] sm:$0xf]
          %v407 = vld [vmem:[%s266 + $0x78] sm:$0xf]
          %v408 = vld [vmem:[%s266 + $0x7c] sm:$0xf]
          %v409 = vld [vmem:[%s275] sm:$0x1]
          %v411 = vperm.slane %v409, 0
          %v445 = vunpack.c.l.b16 %v377
          %v446 = vunpack.c.l.b16 %v378
          %v447 = vunpack.c.l.b16 %v379
          %v448 = vunpack.c.l.b16 %v380
          %v449 = vunpack.c.l.b16 %v381
          %v450 = vunpack.c.l.b16 %v382
          %v451 = vunpack.c.l.b16 %v383
          %v452 = vunpack.c.l.b16 %v384
          %v453 = vunpack.c.l.b16 %v385
          %v454 = vunpack.c.l.b16 %v386
          %v455 = vunpack.c.l.b16 %v387
          %v456 = vunpack.c.l.b16 %v388
          %v457 = vunpack.c.l.b16 %v389
          %v458 = vunpack.c.l.b16 %v390
          %v459 = vunpack.c.l.b16 %v391
          %v460 = vunpack.c.l.b16 %v392
          %v461 = vunpack.c.l.b16 %v393
          %v462 = vunpack.c.l.b16 %v394
          %v463 = vunpack.c.l.b16 %v395
          %v464 = vunpack.c.l.b16 %v396
          %v465 = vunpack.c.l.b16 %v397
          %v466 = vunpack.c.l.b16 %v398
          %v467 = vunpack.c.l.b16 %v399
          %v468 = vunpack.c.l.b16 %v400
          %v469 = vunpack.c.l.b16 %v401
          %v470 = vunpack.c.l.b16 %v402
          %v471 = vunpack.c.l.b16 %v403
          %v472 = vunpack.c.l.b16 %v404
          %v473 = vunpack.c.l.b16 %v405
          %v474 = vunpack.c.l.b16 %v406
          %v475 = vunpack.c.l.b16 %v407
          %v476 = vunpack.c.l.b16 %v408
          %v477 = vpack.c.b16 %v446, %v445
          %v478 = vpack.c.b16 %v448, %v447
          %v479 = vpack.c.b16 %v450, %v449
          %v480 = vpack.c.b16 %v452, %v451
          %v481 = vpack.c.b16 %v454, %v453
          %v482 = vpack.c.b16 %v456, %v455
          %v483 = vpack.c.b16 %v458, %v457
          %v484 = vpack.c.b16 %v460, %v459
          %v485 = vpack.c.b16 %v462, %v461
          %v486 = vpack.c.b16 %v464, %v463
          %v487 = vpack.c.b16 %v466, %v465
          %v488 = vpack.c.b16 %v468, %v467
          %v489 = vpack.c.b16 %v470, %v469
          %v490 = vpack.c.b16 %v472, %v471
          %v491 = vpack.c.b16 %v474, %v473
          %v492 = vpack.c.b16 %v476, %v475
          %509 = vmatpush.bf16.msra.mxu0 %v484
          %510 = vmatpush.bf16.msra.mxu0 %v483
          %511 = vmatpush.bf16.msra.mxu0 %v482
          %512 = vmatpush.bf16.msra.mxu0 %v481
          %513 = vmatpush.bf16.msra.mxu0 %v480
          %514 = vmatpush.bf16.msra.mxu0 %v479
          %515 = vmatpush.bf16.msra.mxu0 %v478
          %516 = vmatpush.bf16.msra.mxu0 %v477
          %517 = vmatmul.bf16.gmra.mxu0 %v375
          %v518 = vpop.f32.mrf.mxu0
          %v519 = vadd.f32 %v411, %v518
          %v520 = vpop.f32.mrf.mxu0
          %v521 = vadd.f32 %v411, %v520
          %522 = vdwg.mxu0
          %523 = vmatpush.bf16.msra.mxu0 %v492
          %524 = vmatpush.bf16.msra.mxu0 %v491
          %525 = vmatpush.bf16.msra.mxu0 %v490
          %526 = vmatpush.bf16.msra.mxu0 %v489
          %527 = vmatpush.bf16.msra.mxu0 %v488
          %528 = vmatpush.bf16.msra.mxu0 %v487
          %529 = vmatpush.bf16.msra.mxu0 %v486
          %530 = vmatpush.bf16.msra.mxu0 %v485
          %531 = vmatmul.bf16.gmra.mxu0 %v349
          %v532 = vpop.f32.mrf.mxu0
          %v533 = vadd.f32 %v519, %v532
          %v534 = vpop.f32.mrf.mxu0
          %v535 = vadd.f32 %v521, %v534
          %536 = vdwg.mxu0
          %p537 = scmp.eq.s32.totalorder %s24, 2
          %p538 = scmp.ne.s32.totalorder %s24, 2
          // Predicated region
          $region61: #{tpu_custom_call.1} parent=59 // pred_check
            %p539 = pneg %p538
          $region62: #{tpu_custom_call.1} parent=59 // pred_check_branch
            %541 = sbr.rel (%p539) target = $region64
          $region63: #{tpu_custom_call.1} parent=59 // pred_region
            %v542 = vtanh.pop %v533
            %v543 = vtanh.pop %v535
            %v544 = vpack.c.bf16 %v542, %v542
            %v545 = vpack.c.bf16 %v543, %v543
            %546 = vst [vmem:[#allocation3] sm:$0xf] %v544
            %547 = vst [vmem:[#allocation3 + $0x4] sm:$0xf] %v545
          $region64: #{tpu_custom_call.1} parent=59 // pred_fallthru
            _
          // Predicated region
          $region65: #{tpu_custom_call.1} parent=59 // pred_check
            %p548 = pneg %p537
          $region66: #{tpu_custom_call.1} parent=59 // pred_check_branch
            %550 = sbr.rel (%p548) target = $region68
          $region67: #{tpu_custom_call.1} parent=59 // pred_region
            %v551 = vsub.f32 0.0, %v533
            %v552 = vsub.f32 0.0, %v535
            %v553 = vmul.f32 %v551, 1.442695
            %v554 = vpow.pop %v553
            %v555 = vmul.f32 %v552, 1.442695
            %v556 = vpow.pop %v555
            %v557 = vadd.f32 %v554, 1.0
            %v558 = vadd.f32 %v556, 1.0
            %v559 = vrcp.pop %v557
            %v560 = vrcp.pop %v558
            %561 = vst [vmem:[%s304] sm:$0xff] %v559
            %562 = vst [vmem:[%s304 + $0x8] sm:$0xff] %v560
          $region68: #{tpu_custom_call.1} parent=59 // pred_fallthru
            _
        $region60: #{tpu_custom_call.1} parent=35 // pred_fallthru
          _
        %p563 = scmp.eq.s32.totalorder %s331, 1
        // Predicated region
        $region69: #{tpu_custom_call.1} parent=35 // pred_check
          %p564 = pneg %p563
        $region70: #{tpu_custom_call.1} parent=35 // pred_check_branch
          %566 = sbr.rel (%p564) target = $region72
        $region71: #{tpu_custom_call.1} parent=35 // pred_region
          %v567 = vld [vmem:[#allocation3] sm:$0xf]
          %v568 = vld [vmem:[#allocation3 + $0x4] sm:$0xf]
          %v569 = vld [vmem:[#allocation4] sm:$0xf]
          %v570 = vld [vmem:[#allocation4 + $0x4] sm:$0xf]
          %v573 = vunpack.c.l.b16 %v569
          %v574 = vunpack.c.l.b16 %v570
          %v575 = vpack.c.b16 %v574, %v573
          %v578 = vunpack.c.l.b16 %v567
          %v579 = vunpack.c.l.b16 %v568
          %v580 = vpack.c.b16 %v579, %v578
          %vm582 = vcmask 130048
          %v584 = vsel %vm582, %v575, 0
          %586 = vmatpush.bf16.msra.mxu0 0
          %587 = vmatpush.bf16.msra.mxu0 0
          %588 = vmatpush.bf16.msra.mxu0 0
          %589 = vmatpush.bf16.msra.mxu0 0
          %590 = vmatpush.bf16.msra.mxu0 0
          %591 = vmatpush.bf16.msra.mxu0 0
          %592 = vmatpush.bf16.msra.mxu0 0
          %593 = vmatpush.bf16.msra.mxu0 %v580
          %594 = vmatmul.bf16.gmra.mxu0 %v584
          %v595 = vpop.f32.mrf.mxu0
          %v596 = vadd.f32 0.0, %v595
          %v597 = vpop.f32.mrf.mxu0
          %v598 = vadd.f32 0.0, %v597
          %599 = vdwg.mxu0
          %v600 = vpack.c.bf16 %v596, %v596
          %v601 = vpack.c.bf16 %v598, %v598
          %v604 = vunpack.c.l.b16 %v600
          %v605 = vunpack.c.l.b16 %v601
          %v606 = vpack.c.b16 %v605, %v604
          %v608 = vld [vmem:[%s266] sm:$0xf]
          %v609 = vld [vmem:[%s266 + $0x4] sm:$0xf]
          %v610 = vld [vmem:[%s266 + $0x8] sm:$0xf]
          %v611 = vld [vmem:[%s266 + $0xc] sm:$0xf]
          %v612 = vld [vmem:[%s266 + $0x10] sm:$0xf]
          %v613 = vld [vmem:[%s266 + $0x14] sm:$0xf]
          %v614 = vld [vmem:[%s266 + $0x18] sm:$0xf]
          %v615 = vld [vmem:[%s266 + $0x1c] sm:$0xf]
          %v616 = vld [vmem:[%s266 + $0x20] sm:$0xf]
          %v617 = vld [vmem:[%s266 + $0x24] sm:$0xf]
          %v618 = vld [vmem:[%s266 + $0x28] sm:$0xf]
          %v619 = vld [vmem:[%s266 + $0x2c] sm:$0xf]
          %v620 = vld [vmem:[%s266 + $0x30] sm:$0xf]
          %v621 = vld [vmem:[%s266 + $0x34] sm:$0xf]
          %v622 = vld [vmem:[%s266 + $0x38] sm:$0xf]
          %v623 = vld [vmem:[%s266 + $0x3c] sm:$0xf]
          %v624 = vld [vmem:[%s266 + $0x40] sm:$0xf]
          %v625 = vld [vmem:[%s266 + $0x44] sm:$0xf]
          %v626 = vld [vmem:[%s266 + $0x48] sm:$0xf]
          %v627 = vld [vmem:[%s266 + $0x4c] sm:$0xf]
          %v628 = vld [vmem:[%s266 + $0x50] sm:$0xf]
          %v629 = vld [vmem:[%s266 + $0x54] sm:$0xf]
          %v630 = vld [vmem:[%s266 + $0x58] sm:$0xf]
          %v631 = vld [vmem:[%s266 + $0x5c] sm:$0xf]
          %v632 = vld [vmem:[%s266 + $0x60] sm:$0xf]
          %v633 = vld [vmem:[%s266 + $0x64] sm:$0xf]
          %v634 = vld [vmem:[%s266 + $0x68] sm:$0xf]
          %v635 = vld [vmem:[%s266 + $0x6c] sm:$0xf]
          %v636 = vld [vmem:[%s266 + $0x70] sm:$0xf]
          %v637 = vld [vmem:[%s266 + $0x74] sm:$0xf]
          %v638 = vld [vmem:[%s266 + $0x78] sm:$0xf]
          %v639 = vld [vmem:[%s266 + $0x7c] sm:$0xf]
          %v640 = vld [vmem:[%s275] sm:$0x1]
          %v642 = vperm.slane %v640, 0
          %v676 = vunpack.c.l.b16 %v608
          %v677 = vunpack.c.l.b16 %v609
          %v678 = vunpack.c.l.b16 %v610
          %v679 = vunpack.c.l.b16 %v611
          %v680 = vunpack.c.l.b16 %v612
          %v681 = vunpack.c.l.b16 %v613
          %v682 = vunpack.c.l.b16 %v614
          %v683 = vunpack.c.l.b16 %v615
          %v684 = vunpack.c.l.b16 %v616
          %v685 = vunpack.c.l.b16 %v617
          %v686 = vunpack.c.l.b16 %v618
          %v687 = vunpack.c.l.b16 %v619
          %v688 = vunpack.c.l.b16 %v620
          %v689 = vunpack.c.l.b16 %v621
          %v690 = vunpack.c.l.b16 %v622
          %v691 = vunpack.c.l.b16 %v623
          %v692 = vunpack.c.l.b16 %v624
          %v693 = vunpack.c.l.b16 %v625
          %v694 = vunpack.c.l.b16 %v626
          %v695 = vunpack.c.l.b16 %v627
          %v696 = vunpack.c.l.b16 %v628
          %v697 = vunpack.c.l.b16 %v629
          %v698 = vunpack.c.l.b16 %v630
          %v699 = vunpack.c.l.b16 %v631
          %v700 = vunpack.c.l.b16 %v632
          %v701 = vunpack.c.l.b16 %v633
          %v702 = vunpack.c.l.b16 %v634
          %v703 = vunpack.c.l.b16 %v635
          %v704 = vunpack.c.l.b16 %v636
          %v705 = vunpack.c.l.b16 %v637
          %v706 = vunpack.c.l.b16 %v638
          %v707 = vunpack.c.l.b16 %v639
          %v708 = vpack.c.b16 %v677, %v676
          %v709 = vpack.c.b16 %v679, %v678
          %v710 = vpack.c.b16 %v681, %v680
          %v711 = vpack.c.b16 %v683, %v682
          %v712 = vpack.c.b16 %v685, %v684
          %v713 = vpack.c.b16 %v687, %v686
          %v714 = vpack.c.b16 %v689, %v688
          %v715 = vpack.c.b16 %v691, %v690
          %v716 = vpack.c.b16 %v693, %v692
          %v717 = vpack.c.b16 %v695, %v694
          %v718 = vpack.c.b16 %v697, %v696
          %v719 = vpack.c.b16 %v699, %v698
          %v720 = vpack.c.b16 %v701, %v700
          %v721 = vpack.c.b16 %v703, %v702
          %v722 = vpack.c.b16 %v705, %v704
          %v723 = vpack.c.b16 %v707, %v706
          %740 = vmatpush.bf16.msra.mxu0 %v715
          %741 = vmatpush.bf16.msra.mxu0 %v714
          %742 = vmatpush.bf16.msra.mxu0 %v713
          %743 = vmatpush.bf16.msra.mxu0 %v712
          %744 = vmatpush.bf16.msra.mxu0 %v711
          %745 = vmatpush.bf16.msra.mxu0 %v710
          %746 = vmatpush.bf16.msra.mxu0 %v709
          %747 = vmatpush.bf16.msra.mxu0 %v708
          %748 = vmatmul.bf16.gmra.mxu0 %v606
          %v749 = vpop.f32.mrf.mxu0
          %v750 = vadd.f32 %v642, %v749
          %v751 = vpop.f32.mrf.mxu0
          %v752 = vadd.f32 %v642, %v751
          %753 = vdwg.mxu0
          %754 = vmatpush.bf16.msra.mxu0 %v723
          %755 = vmatpush.bf16.msra.mxu0 %v722
          %756 = vmatpush.bf16.msra.mxu0 %v721
          %757 = vmatpush.bf16.msra.mxu0 %v720
          %758 = vmatpush.bf16.msra.mxu0 %v719
          %759 = vmatpush.bf16.msra.mxu0 %v718
          %760 = vmatpush.bf16.msra.mxu0 %v717
          %761 = vmatpush.bf16.msra.mxu0 %v716
          %762 = vmatmul.bf16.gmra.mxu0 %v580
          %v763 = vpop.f32.mrf.mxu0
          %v764 = vadd.f32 %v750, %v763
          %v765 = vpop.f32.mrf.mxu0
          %v766 = vadd.f32 %v752, %v765
          %767 = vdwg.mxu0
          %p768 = scmp.eq.s32.totalorder %s24, 2
          %p769 = scmp.ne.s32.totalorder %s24, 2
          // Predicated region
          $region73: #{tpu_custom_call.1} parent=71 // pred_check
            %p770 = pneg %p769
          $region74: #{tpu_custom_call.1} parent=71 // pred_check_branch
            %772 = sbr.rel (%p770) target = $region76
          $region75: #{tpu_custom_call.1} parent=71 // pred_region
            %v773 = vtanh.pop %v764
            %v774 = vtanh.pop %v766
            %v775 = vpack.c.bf16 %v773, %v773
            %v776 = vpack.c.bf16 %v774, %v774
            %777 = vst [vmem:[#allocation2] sm:$0xf] %v775
            %778 = vst [vmem:[#allocation2 + $0x4] sm:$0xf] %v776
          $region76: #{tpu_custom_call.1} parent=71 // pred_fallthru
            _
          // Predicated region
          $region77: #{tpu_custom_call.1} parent=71 // pred_check
            %p779 = pneg %p768
          $region78: #{tpu_custom_call.1} parent=71 // pred_check_branch
            %781 = sbr.rel (%p779) target = $region80
          $region79: #{tpu_custom_call.1} parent=71 // pred_region
            %v782 = vsub.f32 0.0, %v764
            %v783 = vsub.f32 0.0, %v766
            %v784 = vmul.f32 %v782, 1.442695
            %v785 = vpow.pop %v784
            %v786 = vmul.f32 %v783, 1.442695
            %v787 = vpow.pop %v786
            %v788 = vadd.f32 %v785, 1.0
            %v789 = vadd.f32 %v787, 1.0
            %v790 = vrcp.pop %v788
            %v791 = vrcp.pop %v789
            %792 = vst [vmem:[%s304] sm:$0xff] %v790
            %793 = vst [vmem:[%s304 + $0x8] sm:$0xff] %v791
          $region80: #{tpu_custom_call.1} parent=71 // pred_fallthru
            _
        $region72: #{tpu_custom_call.1} parent=35 // pred_fallthru
          _
        %s794 = sand.u32 %s143, 1
        %s795 = scalar_lea.sflag [#allocation6], %s794
        %s796 = sand.u32 %s143, 1
        %s797 = smul.addr %s796, 16
        %s798 = scalar_lea.vmem [#allocation11], %s797
        // Predicated region
        $region81: #{tpu_custom_call.1} parent=35 // pred_check
          %p799 = pneg %p153
        $region82: #{tpu_custom_call.1} parent=35 // pred_check_branch
          %801 = sbr.rel (%p799) target = $region84
        $region83: #{tpu_custom_call.1} parent=35 // pred_region
          %p802 = scmp.eq.s32.totalorder %s24, 2
          %s803 = scalar_select %p802, %s25, 0
          %s804 = smul.u32 2, %s803
          %806 = vsyncadd %s795, 0
          %s807 = smul.addr %s804, 8
          %s808 = scalar_lea.hbm %s4, %s807
          %s809 = sshll.u32 %s798, 4
          %s810 = int_to_ptr.vmem [resolvable:$true] %s809
          %s811 = sshll.u32 %s808, 4
          %s812 = int_to_ptr.hbm [resolvable:$true] %s811
          %817 = dma.vmem_to_hbm [thread:$0]  %s810, 256, %s812, %s795, 128, 128, 8
        $region84: #{tpu_custom_call.1} parent=35 // pred_fallthru
          _
      $region36: #{tpu_custom_call.1} parent=5 // pred_fallthru
        _
      %p818 = scmp.le.s32.totalorder 2, %s15
      // Predicated region
      $region85: #{tpu_custom_call.1} parent=5 // pred_check
        %p819 = pneg %p818
      $region86: #{tpu_custom_call.1} parent=5 // pred_check_branch
        %821 = sbr.rel (%p819) target = $region88
      $region87: #{tpu_custom_call.1} parent=5 // pred_region
        %s822 = ssub.s32 %s15, 2
        // Predicated region
        $region89: #{tpu_custom_call.1} parent=87 // pred_check
          %p823 = pneg %p159
        $region90: #{tpu_custom_call.1} parent=87 // pred_check_branch
          %825 = sbr.rel (%p823) target = $region92
        $region91: #{tpu_custom_call.1} parent=87 // pred_region
          %s826 = sand.u32 %s144, 1
          %s827 = scalar_lea.sflag [#allocation6], %s826
          %s828 = sand.u32 %s144, 1
          %s829 = smul.addr %s828, 16
          %s830 = scalar_lea.vmem [#allocation11], %s829
          %832 = dma.done %s827, 256
        $region92: #{tpu_custom_call.1} parent=87 // pred_fallthru
          _
      $region88: #{tpu_custom_call.1} parent=5 // pred_fallthru
        _
    $region6: #{tpu_custom_call.1} parent=1 // loop_footer
      %s19 = sadd.s32 1, %s15
    $region7: #{tpu_custom_call.1} parent=1 // loop_footer_branch
      %14 = sbr.rel target = $region3
    $region8: #{tpu_custom_call.1} parent=1 // loop_exit
      _
    %833 = vsyncpa [#allocation5], 1
    %s834 = scalar_lea.sflag [#allocation5], 1
    %835 = vsyncpa %s834, 1
    %836 = vsyncpa [#allocation8], 1
    %837 = vsyncpa [#allocation6], 1
    %s838 = scalar_lea.sflag [#allocation6], 1
    %839 = vsyncpa %s838, 1

// kernel: tpu_custom_call.1
$region0: #{tpu_custom_call.1}
  #allocation0 [shape = 'u32[]', space=smem, size = 0x4, offset = 0x4, fixed_abs, tag = 'smem constant byte address 0x4 - core index']
  #allocation1 [shape = 'u32[72,128]{1,0:T(1,128)}', space=vmem, size = 0x9000, scoped, tag = 'internal scratch']
  #allocation2 [shape = 'bf16[16,128]{1,0:T(8,128)(2,1)}', space=vmem, size = 0x1000, scoped, tag = 'scratch operand']
  #allocation3 [shape = 'bf16[16,128]{1,0:T(8,128)(2,1)}', space=vmem, size = 0x1000, scoped, tag = 'scratch operand']
  %s0 = inlined_call_operand.hbm [shape: bf16[16,16], index: 0, kind: input, shape index: {}]
  %s1 = inlined_call_operand.hbm [shape: bf16[16,128], index: 1, kind: input, shape index: {}]
  %s2 = inlined_call_operand.hbm [shape: bf16[3,256,128], index: 2, kind: input, shape index: {}]
  %s3 = inlined_call_operand.hbm [shape: f32[3,1,128], index: 3, kind: input, shape index: {}]
  %s4 = inlined_call_operand.hbm [shape: f32[16,128], index: 4, kind: output, shape index: {}]
  %s5 = sld [smem:[#allocation0]]
  $region93: #{tpu_custom_call.1} parent=0
    _
  %s7 = ssub.s32 1, %s5
  %s8 = scalar_select 0, %s7, %s5
  $region1: #{tpu_custom_call.1} parent=0
    #allocation4 [shape = 'u8[4096]{0}', space=vmem, size = 0x1000, scoped, tag = 'input window, operand 0, single buffered']
    #allocation5 [shape = 's32[2]{0}', space=sflag, size = 0x8, scoped, tag = 'scoped memory for tpu_custom_call.1']
    #allocation6 [shape = 's32[2]{0}', space=sflag, size = 0x8, scoped, tag = 'scoped memory for tpu_custom_call.1']
    #allocation7 [shape = 'u8[4096]{0}', space=vmem, size = 0x1000, scoped, tag = 'input window, operand 1, single buffered']
    #allocation8 [shape = 's32[1]{0}', space=sflag, size = 0x4, scoped, tag = 'scoped memory for tpu_custom_call.1']
    #allocation9 [shape = 'u8[131072]{0}', space=vmem, size = 0x20000, scoped, tag = 'input window, operand 2']
    #allocation10 [shape = 'u8[1024]{0}', space=vmem, size = 0x400, scoped, tag = 'input window, operand 3']
    #allocation11 [shape = 'u8[16384]{0}', space=vmem, size = 0x4000, scoped, tag = 'output window, operand 0']
    %9 = vsyncpa [#allocation5], 0
    %10 = vsyncpa [#allocation8], 0
    %11 = vsyncpa [#allocation6], 0
    %s12 = scalar_lea.sflag [#allocation6], 1
    %13 = vsyncpa %s12, 0
    loop: start=0, step=1, limit=5
    $region2: #{tpu_custom_call.1} parent=1 // loop_pre_header
      _
    $region3: #{tpu_custom_call.1} parent=1 // loop_header
      %s15 = sphi 0, %s19
      %p16 = scmp.ge.s32.totalorder %s15, 5
      %s22 = sphi 0, %s34
      %s23 = sphi 0, %s30
      %s24 = sphi 0, %s22
      %s25 = sphi 0, %s23
      %s26 = sphi 0, %s24
      %s27 = sphi 0, %s25
      %s37 = sphi 0, %s39
      %s40 = sphi 0, %s37
      %s41 = sphi 0, %s40
      %s57 = sphi 0, %s41
      %s61 = sphi 0, %s61
      %s63 = sphi 0, %s61
      %s64 = sphi 0, %s63
      %s78 = sphi 0, %s64
      %s84 = sphi 0, %s86
      %s87 = sphi 0, %s84
      %s88 = sphi 0, %s87
      %s104 = sphi 0, %s88
      %s110 = sphi 0, %s112
      %s113 = sphi 0, %s110
      %s114 = sphi 0, %s113
      %s130 = sphi 0, %s114
      %s140 = sphi 0, %s142
      %s143 = sphi 0, %s140
      %s144 = sphi 0, %s143
      %s160 = sphi 0, %s144
    $region4: #{tpu_custom_call.1} parent=1 // loop_header_branch
      %18 = sbr.rel (%p16) target = $region8
    $region5: #{tpu_custom_call.1} parent=1 // loop_body
      %s20 = ssub.s32 %s15, 1
      %s21 = ssub.s32 %s15, 2
      %s28 = sadd.s32 1, %s23
      %p29 = scmp.ge.s32.totalorder %s28, 1
      %s30 = scalar_select %p29, 0, %s28
      %s31 = sadd.s32 1, %s22
      %s32 = scalar_select %p29, %s31, %s22
      %p33 = scmp.ge.s32.totalorder %s32, 3
      %s34 = scalar_select %p33, 0, %s32
      %s35 = ssub.s32 %s23, %s30
      %p36 = scmp.eq.s32.totalorder %s35, 0
      %s38 = sadd.s32 %s37, 1
      %s39 = scalar_select %p36, %s37, %s38
      %p42 = pneg %p36
      %p43 = scmp.eq.s32.totalorder %s15, 2
      %p44 = por %p42, %p43
      %p45 = scmp.ne.s32.totalorder %s37, %s40
      %p46 = scmp.eq.s32.totalorder %s15, 0
      %p47 = por %p45, %p46
      %p48 = scmp.ne.s32.totalorder %s37, %s40
      %p49 = scmp.eq.s32.totalorder %s20, 2
      %p50 = por %p48, %p49
      %p51 = scmp.ne.s32.totalorder %s40, %s41
      %p52 = scmp.eq.s32.totalorder %s20, 0
      %p53 = por %p51, %p52
      %p54 = scmp.ne.s32.totalorder %s40, %s41
      %p55 = scmp.eq.s32.totalorder %s21, 2
      %p56 = por %p54, %p55
      %p58 = scmp.ne.s32.totalorder %s41, %s57
      %p59 = scmp.eq.s32.totalorder %s21, 0
      %p60 = por %p58, %p59
      %s62 = sadd.s32 %s61, 1
      %p65 = scmp.eq.s32.totalorder %s15, 2
      %p66 = scmp.ne.s32.totalorder %s61, %s63
      %p67 = scmp.eq.s32.totalorder %s15, 0
      %p68 = por %p66, %p67
      %p69 = scmp.ne.s32.totalorder %s61, %s63
      %p70 = scmp.eq.s32.totalorder %s20, 2
      %p71 = por %p69, %p70
      %p72 = scmp.ne.s32.totalorder %s63, %s64
      %p73 = scmp.eq.s32.totalorder %s20, 0
      %p74 = por %p72, %p73
      %p75 = scmp.ne.s32.totalorder %s63, %s64
      %p76 = scmp.eq.s32.totalorder %s21, 2
      %p77 = por %p75, %p76
      %p79 = scmp.ne.s32.totalorder %s64, %s78
      %p80 = scmp.eq.s32.totalorder %s21, 0
      %p81 = por %p79, %p80
      %s82 = ssub.s32 %s22, %s34
      %p83 = scmp.eq.s32.totalorder %s82, 0
      %s85 = sadd.s32 %s84, 1
      %s86 = scalar_select %p83, %s84, %s85
      %p89 = pneg %p83
      %p90 = scmp.eq.s32.totalorder %s15, 2
      %p91 = por %p89, %p90
      %p92 = scmp.ne.s32.totalorder %s84, %s87
      %p93 = scmp.eq.s32.totalorder %s15, 0
      %p94 = por %p92, %p93
      %p95 = scmp.ne.s32.totalorder %s84, %s87
      %p96 = scmp.eq.s32.totalorder %s20, 2
      %p97 = por %p95, %p96
      %p98 = scmp.ne.s32.totalorder %s87, %s88
      %p99 = scmp.eq.s32.totalorder %s20, 0
      %p100 = por %p98, %p99
      %p101 = scmp.ne.s32.totalorder %s87, %s88
      %p102 = scmp.eq.s32.totalorder %s21, 2
      %p103 = por %p101, %p102
      %p105 = scmp.ne.s32.totalorder %s88, %s104
      %p106 = scmp.eq.s32.totalorder %s21, 0
      %p107 = por %p105, %p106
      %s108 = ssub.s32 %s22, %s34
      %p109 = scmp.eq.s32.totalorder %s108, 0
      %s111 = sadd.s32 %s110, 1
      %s112 = scalar_select %p109, %s110, %s111
      %p115 = pneg %p109
      %p116 = scmp.eq.s32.totalorder %s15, 2
      %p117 = por %p115, %p116
      %p118 = scmp.ne.s32.totalorder %s110, %s113
      %p119 = scmp.eq.s32.totalorder %s15, 0
      %p120 = por %p118, %p119
      %p121 = scmp.ne.s32.totalorder %s110, %s113
      %p122 = scmp.eq.s32.totalorder %s20, 2
      %p123 = por %p121, %p122
      %p124 = scmp.ne.s32.totalorder %s113, %s114
      %p125 = scmp.eq.s32.totalorder %s20, 0
      %p126 = por %p124, %p125
      %p127 = scmp.ne.s32.totalorder %s113, %s114
      %p128 = scmp.eq.s32.totalorder %s21, 2
      %p129 = por %p127, %p128
      %p131 = scmp.ne.s32.totalorder %s114, %s130
      %p132 = scmp.eq.s32.totalorder %s21, 0
      %p133 = por %p131, %p132
      %p134 = scmp.eq.s32.totalorder %s22, 2
      %s135 = scalar_select %p134, %s23, 0
      %p136 = scmp.eq.s32.totalorder %s34, 2
      %s137 = scalar_select %p136, %s30, 0
      %s138 = ssub.s32 %s135, %s137
      %p139 = scmp.eq.s32.totalorder %s138, 0
      %s141 = sadd.s32 %s140, 1
      %s142 = scalar_select %p139, %s140, %s141
      %p145 = pneg %p139
      %p146 = scmp.eq.s32.totalorder %s15, 2
      %p147 = por %p145, %p146
      %p148 = scmp.ne.s32.totalorder %s140, %s143
      %p149 = scmp.eq.s32.totalorder %s15, 0
      %p150 = por %p148, %p149
      %p151 = scmp.ne.s32.totalorder %s140, %s143
      %p152 = scmp.eq.s32.totalorder %s20, 2
      %p153 = por %p151, %p152
      %p154 = scmp.ne.s32.totalorder %s143, %s144
      %p155 = scmp.eq.s32.totalorder %s20, 0
      %p156 = por %p154, %p155
      %p157 = scmp.ne.s32.totalorder %s143, %s144
      %p158 = scmp.eq.s32.totalorder %s21, 2
      %p159 = por %p157, %p158
      %p161 = scmp.ne.s32.totalorder %s144, %s160
      %p162 = scmp.eq.s32.totalorder %s21, 0
      %p163 = por %p161, %p162
      %p164 = scmp.le.s32.totalorder 1, %s15
      %p165 = scmp.lt.s32.totalorder %s15, 4
      %p166 = pnand %p164, %p165
      %p167 = pneg %p166
      // Predicated region
      $region9: #{tpu_custom_call.1} parent=5 // pred_check
        _
      $region10: #{tpu_custom_call.1} parent=5 // pred_check_branch
        %169 = sbr.rel (%p166) target = $region12
      $region11: #{tpu_custom_call.1} parent=5 // pred_region
        %s170 = ssub.s32 %s15, 1
        // Predicated region
        $region13: #{tpu_custom_call.1} parent=11 // pred_check
          %p171 = pneg %p53
        $region14: #{tpu_custom_call.1} parent=11 // pred_check_branch
          %173 = sbr.rel (%p171) target = $region16
        $region15: #{tpu_custom_call.1} parent=11 // pred_region
          %s174 = smul.u32 2, %s25
          %176 = vsyncadd [#allocation5], 0
          %s177 = smul.addr %s174, 4
          %s178 = scalar_lea.hbm %s0, %s177
          %s179 = sshll.u32 %s178, 4
          %s180 = int_to_ptr.hbm [resolvable:$true] %s179
          %s181 = sshll.u32 [#allocation4], 4
          %s182 = int_to_ptr.vmem [resolvable:$true] %s181
          %187 = dma.hbm_to_vmem [thread:$0]  %s180, 128, %s182, [#allocation5], 64, 64, 4
        $region16: #{tpu_custom_call.1} parent=11 // pred_fallthru
          _
        // Predicated region
        $region17: #{tpu_custom_call.1} parent=11 // pred_check
          %p188 = pneg %p74
        $region18: #{tpu_custom_call.1} parent=11 // pred_check_branch
          %190 = sbr.rel (%p188) target = $region20
        $region19: #{tpu_custom_call.1} parent=11 // pred_region
          %192 = vsyncadd [#allocation8], 0
          %s193 = sshll.u32 %s1, 4
          %s194 = int_to_ptr.hbm [resolvable:$true] %s193
          %s195 = sshll.u32 [#allocation7], 4
          %s196 = int_to_ptr.vmem [resolvable:$true] %s195
          %201 = dma.hbm_to_vmem [thread:$0]  %s194, 128, %s196, [#allocation8], 64, 64, 4
        $region20: #{tpu_custom_call.1} parent=11 // pred_fallthru
          _
      $region12: #{tpu_custom_call.1} parent=5 // pred_fallthru
        _
      %p202 = scmp.lt.s32.totalorder %s15, 3
      // Predicated region
      $region21: #{tpu_custom_call.1} parent=5 // pred_check
        %p203 = pneg %p202
      $region22: #{tpu_custom_call.1} parent=5 // pred_check_branch
        %205 = sbr.rel (%p203) target = $region24
      $region23: #{tpu_custom_call.1} parent=5 // pred_region
        // Predicated region
        $region25: #{tpu_custom_call.1} parent=23 // pred_check
          %p206 = pneg %p94
        $region26: #{tpu_custom_call.1} parent=23 // pred_check_branch
          %208 = sbr.rel (%p206) target = $region28
        $region27: #{tpu_custom_call.1} parent=23 // pred_region
          %s209 = sand.u32 %s15, 1
          %s210 = scalar_lea.sflag [#allocation5], %s209
          %s211 = sand.u32 %s84, 1
          %s212 = smul.addr %s211, 128
          %s213 = scalar_lea.vmem [#allocation9], %s212
          %215 = vsyncadd %s210, 0
          %s216 = smul.addr %s22, 32
          %s217 = smul.addr %s216, 4
          %s218 = scalar_lea.hbm %s2, %s217
          %s219 = sshll.u32 %s218, 4
          %s220 = int_to_ptr.hbm [resolvable:$true] %s219
          %s221 = sshll.u32 %s213, 4
          %s222 = int_to_ptr.vmem [resolvable:$true] %s221
          %227 = dma.hbm_to_vmem [thread:$0]  %s220, 2048, %s222, %s210, 64, 64, 4
        $region28: #{tpu_custom_call.1} parent=23 // pred_fallthru
          _
        // Predicated region
        $region29: #{tpu_custom_call.1} parent=23 // pred_check
          %p228 = pneg %p120
        $region30: #{tpu_custom_call.1} parent=23 // pred_check_branch
          %230 = sbr.rel (%p228) target = $region32
        $region31: #{tpu_custom_call.1} parent=23 // pred_region
          %s231 = sand.u32 %s15, 1
          %s232 = scalar_lea.sflag [#allocation5], %s231
          %s233 = sand.u32 %s110, 1
          %s234 = scalar_lea.vmem [#allocation10], %s233
          %236 = vsyncadd %s232, 0
          %s237 = scalar_lea.hbm %s3, %s22
          %s239 = sshll.u32 %s237, 4
          %s240 = int_to_ptr.hbm [resolvable:$true] %s239
          %s241 = sshll.u32 %s234, 4
          %s242 = int_to_ptr.vmem [resolvable:$true] %s241
          %244 = dma.hbm_to_vmem [thread:$0]  %s240, 16, %s242, %s232
        $region32: #{tpu_custom_call.1} parent=23 // pred_fallthru
          _
      $region24: #{tpu_custom_call.1} parent=5 // pred_fallthru
        _
      %p245 = scmp.le.s32.totalorder 1, %s15
      %p246 = scmp.lt.s32.totalorder %s15, 4
      %p247 = pnand %p245, %p246
      %p248 = pneg %p247
      // Predicated region
      $region33: #{tpu_custom_call.1} parent=5 // pred_check
        _
      $region34: #{tpu_custom_call.1} parent=5 // pred_check_branch
        %250 = sbr.rel (%p247) target = $region36
      $region35: #{tpu_custom_call.1} parent=5 // pred_region
        %s251 = ssub.s32 %s15, 1
        // Predicated region
        $region37: #{tpu_custom_call.1} parent=35 // pred_check
          %p252 = pneg %p53
        $region38: #{tpu_custom_call.1} parent=35 // pred_check_branch
          %254 = sbr.rel (%p252) target = $region40
        $region39: #{tpu_custom_call.1} parent=35 // pred_region
          %256 = dma.done [#allocation5], 128
        $region40: #{tpu_custom_call.1} parent=35 // pred_fallthru
          _
        // Predicated region
        $region41: #{tpu_custom_call.1} parent=35 // pred_check
          %p257 = pneg %p74
        $region42: #{tpu_custom_call.1} parent=35 // pred_check_branch
          %259 = sbr.rel (%p257) target = $region44
        $region43: #{tpu_custom_call.1} parent=35 // pred_region
          %261 = dma.done [#allocation8], 128
        $region44: #{tpu_custom_call.1} parent=35 // pred_fallthru
          _
        %s262 = sand.u32 %s20, 1
        %s263 = scalar_lea.sflag [#allocation5], %s262
        %s264 = sand.u32 %s87, 1
        %s265 = smul.addr %s264, 128
        %s266 = scalar_lea.vmem [#allocation9], %s265
        // Predicated region
        $region45: #{tpu_custom_call.1} parent=35 // pred_check
          %p267 = pneg %p100
        $region46: #{tpu_custom_call.1} parent=35 // pred_check_branch
          %269 = sbr.rel (%p267) target = $region48
        $region47: #{tpu_custom_call.1} parent=35 // pred_region
          %271 = dma.done %s263, 2048
        $region48: #{tpu_custom_call.1} parent=35 // pred_fallthru
          _
        %s272 = sand.u32 %s20, 1
        %s273 = scalar_lea.sflag [#allocation5], %s272
        %s274 = sand.u32 %s113, 1
        %s275 = scalar_lea.vmem [#allocation10], %s274
        // Predicated region
        $region49: #{tpu_custom_call.1} parent=35 // pred_check
          %p276 = pneg %p126
        $region50: #{tpu_custom_call.1} parent=35 // pred_check_branch
          %278 = sbr.rel (%p276) target = $region52
        $region51: #{tpu_custom_call.1} parent=35 // pred_region
          %280 = dma.done %s273, 16
        $region52: #{tpu_custom_call.1} parent=35 // pred_fallthru
          _
        %p281 = pneg %p53
        %p282 = pneg %p50
        %p283 = pneg %p74
        %p284 = pneg %p71
        %s285 = sand.u32 %s20, 1
        %s286 = scalar_lea.sflag [#allocation5], %s285
        %s287 = sand.u32 %s87, 1
        %s288 = smul.addr %s287, 128
        %s289 = scalar_lea.vmem [#allocation9], %s288
        %p290 = pneg %p100
        %p291 = pneg %p97
        %s292 = sand.u32 %s20, 1
        %s293 = scalar_lea.sflag [#allocation5], %s292
        %s294 = sand.u32 %s113, 1
        %s295 = scalar_lea.vmem [#allocation10], %s294
        %p296 = pneg %p126
        %p297 = pneg %p123
        %p298 = pneg %p156
        %p299 = pneg %p153
        %s300 = sand.u32 %s143, 1
        %s301 = scalar_lea.sflag [#allocation6], %s300
        %s302 = sand.u32 %s143, 1
        %s303 = smul.addr %s302, 16
        %s304 = scalar_lea.vmem [#allocation11], %s303
        %s305 = smul.u32 2, %s25
        %p306 = scmp.eq.s32.totalorder %s24, 2
        %s307 = scalar_select %p306, %s25, 0
        %s308 = smul.u32 2, %s307
        %p310 = scmp.eq.s32.totalorder %s24, 0
        %p311 = scmp.eq.s32.totalorder %s25, 0
        %p312 = pnand %p310, %p311
        %p313 = pneg %p312
        // Predicated region
        $region53: #{tpu_custom_call.1} parent=35 // pred_check
          _
        $region54: #{tpu_custom_call.1} parent=35 // pred_check_branch
          %315 = sbr.rel (%p312) target = $region56
        $region55: #{tpu_custom_call.1} parent=35 // pred_region
          %v316 = vld [vmem:[#allocation7] sm:$0xf]
          %v317 = vld [vmem:[#allocation7 + $0x4] sm:$0xf]
          %318 = vst [vmem:[#allocation2] sm:$0xf] %v316
          %319 = vst [vmem:[#allocation2 + $0x4] sm:$0xf] %v317
        $region56: #{tpu_custom_call.1} parent=35 // pred_fallthru
          _
        %p320 = scmp.lt.s32.totalorder %s24, 0
        %s321 = ssub.s32 0, %s24
        %s322 = scalar_select %p320, %s321, %s24
        %s323 = sand.u32 %s322, 1
        %s324 = ssub.s32 0, %s323
        %s325 = scalar_select %p320, %s324, %s323
        %p326 = scmp.ne.s32.totalorder %s325, 0
        %p327 = scmp.lt.s32.totalorder %s325, 0
        %p328 = pnand %p327, %p326
        %p329 = pneg %p328
        %s330 = sadd.s32 %s325, 2
        %s331 = scalar_select %p329, %s330, %s325
        %p332 = scmp.eq.s32.totalorder %s331, 0
        // Predicated region
        $region57: #{tpu_custom_call.1} parent=35 // pred_check
          %p333 = pneg %p332
        $region58: #{tpu_custom_call.1} parent=35 // pred_check_branch
          %335 = sbr.rel (%p333) target = $region60
        $region59: #{tpu_custom_call.1} parent=35 // pred_region
          %v336 = vld [vmem:[#allocation2] sm:$0xf]
          %v337 = vld [vmem:[#allocation2 + $0x4] sm:$0xf]
          %v338 = vld [vmem:[#allocation4] sm:$0xf]
          %v339 = vld [vmem:[#allocation4 + $0x4] sm:$0xf]
          %v342 = vunpack.c.l.b16 %v338
          %v343 = vunpack.c.l.b16 %v339
          %v344 = vpack.c.b16 %v343, %v342
          %v347 = vunpack.c.l.b16 %v336
          %v348 = vunpack.c.l.b16 %v337
          %v349 = vpack.c.b16 %v348, %v347
          %vm351 = vcmask 130048
          %v353 = vsel %vm351, %v344, 0
          %355 = vmatpush.bf16.msra.mxu0 0
          %356 = vmatpush.bf16.msra.mxu0 0
          %357 = vmatpush.bf16.msra.mxu0 0
          %358 = vmatpush.bf16.msra.mxu0 0
          %359 = vmatpush.bf16.msra.mxu0 0
          %360 = vmatpush.bf16.msra.mxu0 0
          %361 = vmatpush.bf16.msra.mxu0 0
          %362 = vmatpush.bf16.msra.mxu0 %v349
          %363 = vmatmul.bf16.gmra.mxu0 %v353
          %v364 = vpop.f32.mrf.mxu0
          %v365 = vadd.f32 0.0, %v364
          %v366 = vpop.f32.mrf.mxu0
          %v367 = vadd.f32 0.0, %v366
          %368 = vdwg.mxu0
          %v369 = vpack.c.bf16 %v365, %v365
          %v370 = vpack.c.bf16 %v367, %v367
          %v373 = vunpack.c.l.b16 %v369
          %v374 = vunpack.c.l.b16 %v370
          %v375 = vpack.c.b16 %v374, %v373
          %v377 = vld [vmem:[%s266] sm:$0xf]
          %v378 = vld [vmem:[%s266 + $0x4] sm:$0xf]
          %v379 = vld [vmem:[%s266 + $0x8] sm:$0xf]
          %v380 = vld [vmem:[%s266 + $0xc] sm:$0xf]
          %v381 = vld [vmem:[%s266 + $0x10] sm:$0xf]
          %v382 = vld [vmem:[%s266 + $0x14] sm:$0xf]
          %v383 = vld [vmem:[%s266 + $0x18] sm:$0xf]
          %v384 = vld [vmem:[%s266 + $0x1c] sm:$0xf]
          %v385 = vld [vmem:[%s266 + $0x20] sm:$0xf]
          %v386 = vld [vmem:[%s266 + $0x24] sm:$0xf]
          %v387 = vld [vmem:[%s266 + $0x28] sm:$0xf]
          %v388 = vld [vmem:[%s266 + $0x2c] sm:$0xf]
          %v389 = vld [vmem:[%s266 + $0x30] sm:$0xf]
          %v390 = vld [vmem:[%s266 + $0x34] sm:$0xf]
          %v391 = vld [vmem:[%s266 + $0x38] sm:$0xf]
          %v392 = vld [vmem:[%s266 + $0x3c] sm:$0xf]
          %v393 = vld [vmem:[%s266 + $0x40] sm:$0xf]
          %v394 = vld [vmem:[%s266 + $0x44] sm:$0xf]
          %v395 = vld [vmem:[%s266 + $0x48] sm:$0xf]
          %v396 = vld [vmem:[%s266 + $0x4c] sm:$0xf]
          %v397 = vld [vmem:[%s266 + $0x50] sm:$0xf]
          %v398 = vld [vmem:[%s266 + $0x54] sm:$0xf]
          %v399 = vld [vmem:[%s266 + $0x58] sm:$0xf]
          %v400 = vld [vmem:[%s266 + $0x5c] sm:$0xf]
          %v401 = vld [vmem:[%s266 + $0x60] sm:$0xf]
          %v402 = vld [vmem:[%s266 + $0x64] sm:$0xf]
          %v403 = vld [vmem:[%s266 + $0x68] sm:$0xf]
          %v404 = vld [vmem:[%s266 + $0x6c] sm:$0xf]
          %v405 = vld [vmem:[%s266 + $0x70] sm:$0xf]
          %v406 = vld [vmem:[%s266 + $0x74] sm:$0xf]
          %v407 = vld [vmem:[%s266 + $0x78] sm:$0xf]
          %v408 = vld [vmem:[%s266 + $0x7c] sm:$0xf]
          %v409 = vld [vmem:[%s275] sm:$0x1]
          %v411 = vperm.slane %v409, 0
          %v445 = vunpack.c.l.b16 %v377
          %v446 = vunpack.c.l.b16 %v378
          %v447 = vunpack.c.l.b16 %v379
          %v448 = vunpack.c.l.b16 %v380
          %v449 = vunpack.c.l.b16 %v381
          %v450 = vunpack.c.l.b16 %v382
          %v451 = vunpack.c.l.b16 %v383
          %v452 = vunpack.c.l.b16 %v384
          %v453 = vunpack.c.l.b16 %v385
          %v454 = vunpack.c.l.b16 %v386
          %v455 = vunpack.c.l.b16 %v387
          %v456 = vunpack.c.l.b16 %v388
          %v457 = vunpack.c.l.b16 %v389
          %v458 = vunpack.c.l.b16 %v390
          %v459 = vunpack.c.l.b16 %v391
          %v460 = vunpack.c.l.b16 %v392
          %v461 = vunpack.c.l.b16 %v393
          %v462 = vunpack.c.l.b16 %v394
          %v463 = vunpack.c.l.b16 %v395
          %v464 = vunpack.c.l.b16 %v396
          %v465 = vunpack.c.l.b16 %v397
          %v466 = vunpack.c.l.b16 %v398
          %v467 = vunpack.c.l.b16 %v399
          %v468 = vunpack.c.l.b16 %v400
          %v469 = vunpack.c.l.b16 %v401
          %v470 = vunpack.c.l.b16 %v402
          %v471 = vunpack.c.l.b16 %v403
          %v472 = vunpack.c.l.b16 %v404
          %v473 = vunpack.c.l.b16 %v405
          %v474 = vunpack.c.l.b16 %v406
          %v475 = vunpack.c.l.b16 %v407
          %v476 = vunpack.c.l.b16 %v408
          %v477 = vpack.c.b16 %v446, %v445
          %v478 = vpack.c.b16 %v448, %v447
          %v479 = vpack.c.b16 %v450, %v449
          %v480 = vpack.c.b16 %v452, %v451
          %v481 = vpack.c.b16 %v454, %v453
          %v482 = vpack.c.b16 %v456, %v455
          %v483 = vpack.c.b16 %v458, %v457
          %v484 = vpack.c.b16 %v460, %v459
          %v485 = vpack.c.b16 %v462, %v461
          %v486 = vpack.c.b16 %v464, %v463
          %v487 = vpack.c.b16 %v466, %v465
          %v488 = vpack.c.b16 %v468, %v467
          %v489 = vpack.c.b16 %v470, %v469
          %v490 = vpack.c.b16 %v472, %v471
          %v491 = vpack.c.b16 %v474, %v473
          %v492 = vpack.c.b16 %v476, %v475
          %509 = vmatpush.bf16.msra.mxu0 %v484
          %510 = vmatpush.bf16.msra.mxu0 %v483
          %511 = vmatpush.bf16.msra.mxu0 %v482
          %512 = vmatpush.bf16.msra.mxu0 %v481
          %513 = vmatpush.bf16.msra.mxu0 %v480
          %514 = vmatpush.bf16.msra.mxu0 %v479
          %515 = vmatpush.bf16.msra.mxu0 %v478
          %516 = vmatpush.bf16.msra.mxu0 %v477
          %517 = vmatmul.bf16.gmra.mxu0 %v375
          %v518 = vpop.f32.mrf.mxu0
          %v519 = vadd.f32 %v411, %v518
          %v520 = vpop.f32.mrf.mxu0
          %v521 = vadd.f32 %v411, %v520
          %522 = vdwg.mxu0
          %523 = vmatpush.bf16.msra.mxu0 %v492
          %524 = vmatpush.bf16.msra.mxu0 %v491
          %525 = vmatpush.bf16.msra.mxu0 %v490
          %526 = vmatpush.bf16.msra.mxu0 %v489
          %527 = vmatpush.bf16.msra.mxu0 %v488
          %528 = vmatpush.bf16.msra.mxu0 %v487
          %529 = vmatpush.bf16.msra.mxu0 %v486
          %530 = vmatpush.bf16.msra.mxu0 %v485
          %531 = vmatmul.bf16.gmra.mxu0 %v349
          %v532 = vpop.f32.mrf.mxu0
          %v533 = vadd.f32 %v519, %v532
          %v534 = vpop.f32.mrf.mxu0
          %v535 = vadd.f32 %v521, %v534
          %536 = vdwg.mxu0
          %p537 = scmp.eq.s32.totalorder %s24, 2
          %p538 = scmp.ne.s32.totalorder %s24, 2
          // Predicated region
          $region61: #{tpu_custom_call.1} parent=59 // pred_check
            %p539 = pneg %p538
          $region62: #{tpu_custom_call.1} parent=59 // pred_check_branch
            %541 = sbr.rel (%p539) target = $region64
          $region63: #{tpu_custom_call.1} parent=59 // pred_region
            %v542 = vtanh.pop %v533
            %v543 = vtanh.pop %v535
            %v544 = vpack.c.bf16 %v542, %v542
            %v545 = vpack.c.bf16 %v543, %v543
            %546 = vst [vmem:[#allocation3] sm:$0xf] %v544
            %547 = vst [vmem:[#allocation3 + $0x4] sm:$0xf] %v545
          $region64: #{tpu_custom_call.1} parent=59 // pred_fallthru
            _
          // Predicated region
          $region65: #{tpu_custom_call.1} parent=59 // pred_check
            %p548 = pneg %p537
          $region66: #{tpu_custom_call.1} parent=59 // pred_check_branch
            %550 = sbr.rel (%p548) target = $region68
          $region67: #{tpu_custom_call.1} parent=59 // pred_region
            %v551 = vsub.f32 0.0, %v533
            %v552 = vsub.f32 0.0, %v535
            %v553 = vmul.f32 %v551, 1.442695
            %v554 = vpow.pop %v553
            %v555 = vmul.f32 %v552, 1.442695
            %v556 = vpow.pop %v555
            %v557 = vadd.f32 %v554, 1.0
            %v558 = vadd.f32 %v556, 1.0
            %v559 = vrcp.pop %v557
            %v560 = vrcp.pop %v558
            %561 = vst [vmem:[%s304] sm:$0xff] %v559
            %562 = vst [vmem:[%s304 + $0x8] sm:$0xff] %v560
          $region68: #{tpu_custom_call.1} parent=59 // pred_fallthru
            _
        $region60: #{tpu_custom_call.1} parent=35 // pred_fallthru
          _
        %p563 = scmp.eq.s32.totalorder %s331, 1
        // Predicated region
        $region69: #{tpu_custom_call.1} parent=35 // pred_check
          %p564 = pneg %p563
        $region70: #{tpu_custom_call.1} parent=35 // pred_check_branch
          %566 = sbr.rel (%p564) target = $region72
        $region71: #{tpu_custom_call.1} parent=35 // pred_region
          %v567 = vld [vmem:[#allocation3] sm:$0xf]
          %v568 = vld [vmem:[#allocation3 + $0x4] sm:$0xf]
          %v569 = vld [vmem:[#allocation4] sm:$0xf]
          %v570 = vld [vmem:[#allocation4 + $0x4] sm:$0xf]
          %v573 = vunpack.c.l.b16 %v569
          %v574 = vunpack.c.l.b16 %v570
          %v575 = vpack.c.b16 %v574, %v573
          %v578 = vunpack.c.l.b16 %v567
          %v579 = vunpack.c.l.b16 %v568
          %v580 = vpack.c.b16 %v579, %v578
          %vm582 = vcmask 130048
          %v584 = vsel %vm582, %v575, 0
          %586 = vmatpush.bf16.msra.mxu0 0
          %587 = vmatpush.bf16.msra.mxu0 0
          %588 = vmatpush.bf16.msra.mxu0 0
          %589 = vmatpush.bf16.msra.mxu0 0
          %590 = vmatpush.bf16.msra.mxu0 0
          %591 = vmatpush.bf16.msra.mxu0 0
          %592 = vmatpush.bf16.msra.mxu0 0
          %593 = vmatpush.bf16.msra.mxu0 %v580
          %594 = vmatmul.bf16.gmra.mxu0 %v584
          %v595 = vpop.f32.mrf.mxu0
          %v596 = vadd.f32 0.0, %v595
          %v597 = vpop.f32.mrf.mxu0
          %v598 = vadd.f32 0.0, %v597
          %599 = vdwg.mxu0
          %v600 = vpack.c.bf16 %v596, %v596
          %v601 = vpack.c.bf16 %v598, %v598
          %v604 = vunpack.c.l.b16 %v600
          %v605 = vunpack.c.l.b16 %v601
          %v606 = vpack.c.b16 %v605, %v604
          %v608 = vld [vmem:[%s266] sm:$0xf]
          %v609 = vld [vmem:[%s266 + $0x4] sm:$0xf]
          %v610 = vld [vmem:[%s266 + $0x8] sm:$0xf]
          %v611 = vld [vmem:[%s266 + $0xc] sm:$0xf]
          %v612 = vld [vmem:[%s266 + $0x10] sm:$0xf]
          %v613 = vld [vmem:[%s266 + $0x14] sm:$0xf]
          %v614 = vld [vmem:[%s266 + $0x18] sm:$0xf]
          %v615 = vld [vmem:[%s266 + $0x1c] sm:$0xf]
          %v616 = vld [vmem:[%s266 + $0x20] sm:$0xf]
          %v617 = vld [vmem:[%s266 + $0x24] sm:$0xf]
          %v618 = vld [vmem:[%s266 + $0x28] sm:$0xf]
          %v619 = vld [vmem:[%s266 + $0x2c] sm:$0xf]
          %v620 = vld [vmem:[%s266 + $0x30] sm:$0xf]
          %v621 = vld [vmem:[%s266 + $0x34] sm:$0xf]
          %v622 = vld [vmem:[%s266 + $0x38] sm:$0xf]
          %v623 = vld [vmem:[%s266 + $0x3c] sm:$0xf]
          %v624 = vld [vmem:[%s266 + $0x40] sm:$0xf]
          %v625 = vld [vmem:[%s266 + $0x44] sm:$0xf]
          %v626 = vld [vmem:[%s266 + $0x48] sm:$0xf]
          %v627 = vld [vmem:[%s266 + $0x4c] sm:$0xf]
          %v628 = vld [vmem:[%s266 + $0x50] sm:$0xf]
          %v629 = vld [vmem:[%s266 + $0x54] sm:$0xf]
          %v630 = vld [vmem:[%s266 + $0x58] sm:$0xf]
          %v631 = vld [vmem:[%s266 + $0x5c] sm:$0xf]
          %v632 = vld [vmem:[%s266 + $0x60] sm:$0xf]
          %v633 = vld [vmem:[%s266 + $0x64] sm:$0xf]
          %v634 = vld [vmem:[%s266 + $0x68] sm:$0xf]
          %v635 = vld [vmem:[%s266 + $0x6c] sm:$0xf]
          %v636 = vld [vmem:[%s266 + $0x70] sm:$0xf]
          %v637 = vld [vmem:[%s266 + $0x74] sm:$0xf]
          %v638 = vld [vmem:[%s266 + $0x78] sm:$0xf]
          %v639 = vld [vmem:[%s266 + $0x7c] sm:$0xf]
          %v640 = vld [vmem:[%s275] sm:$0x1]
          %v642 = vperm.slane %v640, 0
          %v676 = vunpack.c.l.b16 %v608
          %v677 = vunpack.c.l.b16 %v609
          %v678 = vunpack.c.l.b16 %v610
          %v679 = vunpack.c.l.b16 %v611
          %v680 = vunpack.c.l.b16 %v612
          %v681 = vunpack.c.l.b16 %v613
          %v682 = vunpack.c.l.b16 %v614
          %v683 = vunpack.c.l.b16 %v615
          %v684 = vunpack.c.l.b16 %v616
          %v685 = vunpack.c.l.b16 %v617
          %v686 = vunpack.c.l.b16 %v618
          %v687 = vunpack.c.l.b16 %v619
          %v688 = vunpack.c.l.b16 %v620
          %v689 = vunpack.c.l.b16 %v621
          %v690 = vunpack.c.l.b16 %v622
          %v691 = vunpack.c.l.b16 %v623
          %v692 = vunpack.c.l.b16 %v624
          %v693 = vunpack.c.l.b16 %v625
          %v694 = vunpack.c.l.b16 %v626
          %v695 = vunpack.c.l.b16 %v627
          %v696 = vunpack.c.l.b16 %v628
          %v697 = vunpack.c.l.b16 %v629
          %v698 = vunpack.c.l.b16 %v630
          %v699 = vunpack.c.l.b16 %v631
          %v700 = vunpack.c.l.b16 %v632
          %v701 = vunpack.c.l.b16 %v633
          %v702 = vunpack.c.l.b16 %v634
          %v703 = vunpack.c.l.b16 %v635
          %v704 = vunpack.c.l.b16 %v636
          %v705 = vunpack.c.l.b16 %v637
          %v706 = vunpack.c.l.b16 %v638
          %v707 = vunpack.c.l.b16 %v639
          %v708 = vpack.c.b16 %v677, %v676
          %v709 = vpack.c.b16 %v679, %v678
          %v710 = vpack.c.b16 %v681, %v680
          %v711 = vpack.c.b16 %v683, %v682
          %v712 = vpack.c.b16 %v685, %v684
          %v713 = vpack.c.b16 %v687, %v686
          %v714 = vpack.c.b16 %v689, %v688
          %v715 = vpack.c.b16 %v691, %v690
          %v716 = vpack.c.b16 %v693, %v692
          %v717 = vpack.c.b16 %v695, %v694
          %v718 = vpack.c.b16 %v697, %v696
          %v719 = vpack.c.b16 %v699, %v698
          %v720 = vpack.c.b16 %v701, %v700
          %v721 = vpack.c.b16 %v703, %v702
          %v722 = vpack.c.b16 %v705, %v704
          %v723 = vpack.c.b16 %v707, %v706
          %740 = vmatpush.bf16.msra.mxu0 %v715
          %741 = vmatpush.bf16.msra.mxu0 %v714
          %742 = vmatpush.bf16.msra.mxu0 %v713
          %743 = vmatpush.bf16.msra.mxu0 %v712
          %744 = vmatpush.bf16.msra.mxu0 %v711
          %745 = vmatpush.bf16.msra.mxu0 %v710
          %746 = vmatpush.bf16.msra.mxu0 %v709
          %747 = vmatpush.bf16.msra.mxu0 %v708
          %748 = vmatmul.bf16.gmra.mxu0 %v606
          %v749 = vpop.f32.mrf.mxu0
          %v750 = vadd.f32 %v642, %v749
          %v751 = vpop.f32.mrf.mxu0
          %v752 = vadd.f32 %v642, %v751
          %753 = vdwg.mxu0
          %754 = vmatpush.bf16.msra.mxu0 %v723
          %755 = vmatpush.bf16.msra.mxu0 %v722
          %756 = vmatpush.bf16.msra.mxu0 %v721
          %757 = vmatpush.bf16.msra.mxu0 %v720
          %758 = vmatpush.bf16.msra.mxu0 %v719
          %759 = vmatpush.bf16.msra.mxu0 %v718
          %760 = vmatpush.bf16.msra.mxu0 %v717
          %761 = vmatpush.bf16.msra.mxu0 %v716
          %762 = vmatmul.bf16.gmra.mxu0 %v580
          %v763 = vpop.f32.mrf.mxu0
          %v764 = vadd.f32 %v750, %v763
          %v765 = vpop.f32.mrf.mxu0
          %v766 = vadd.f32 %v752, %v765
          %767 = vdwg.mxu0
          %p768 = scmp.eq.s32.totalorder %s24, 2
          %p769 = scmp.ne.s32.totalorder %s24, 2
          // Predicated region
          $region73: #{tpu_custom_call.1} parent=71 // pred_check
            %p770 = pneg %p769
          $region74: #{tpu_custom_call.1} parent=71 // pred_check_branch
            %772 = sbr.rel (%p770) target = $region76
          $region75: #{tpu_custom_call.1} parent=71 // pred_region
            %v773 = vtanh.pop %v764
            %v774 = vtanh.pop %v766
            %v775 = vpack.c.bf16 %v773, %v773
            %v776 = vpack.c.bf16 %v774, %v774
            %777 = vst [vmem:[#allocation2] sm:$0xf] %v775
            %778 = vst [vmem:[#allocation2 + $0x4] sm:$0xf] %v776
          $region76: #{tpu_custom_call.1} parent=71 // pred_fallthru
            _
          // Predicated region
          $region77: #{tpu_custom_call.1} parent=71 // pred_check
            %p779 = pneg %p768
          $region78: #{tpu_custom_call.1} parent=71 // pred_check_branch
            %781 = sbr.rel (%p779) target = $region80
          $region79: #{tpu_custom_call.1} parent=71 // pred_region
            %v782 = vsub.f32 0.0, %v764
            %v783 = vsub.f32 0.0, %v766
            %v784 = vmul.f32 %v782, 1.442695
            %v785 = vpow.pop %v784
            %v786 = vmul.f32 %v783, 1.442695
            %v787 = vpow.pop %v786
            %v788 = vadd.f32 %v785, 1.0
            %v789 = vadd.f32 %v787, 1.0
            %v790 = vrcp.pop %v788
            %v791 = vrcp.pop %v789
            %792 = vst [vmem:[%s304] sm:$0xff] %v790
            %793 = vst [vmem:[%s304 + $0x8] sm:$0xff] %v791
          $region80: #{tpu_custom_call.1} parent=71 // pred_fallthru
            _
        $region72: #{tpu_custom_call.1} parent=35 // pred_fallthru
          _
        %s794 = sand.u32 %s143, 1
        %s795 = scalar_lea.sflag [#allocation6], %s794
        %s796 = sand.u32 %s143, 1
        %s797 = smul.addr %s796, 16
        %s798 = scalar_lea.vmem [#allocation11], %s797
        // Predicated region
        $region81: #{tpu_custom_call.1} parent=35 // pred_check
          %p799 = pneg %p153
        $region82: #{tpu_custom_call.1} parent=35 // pred_check_branch
          %801 = sbr.rel (%p799) target = $region84
        $region83: #{tpu_custom_call.1} parent=35 // pred_region
          %p802 = scmp.eq.s32.totalorder %s24, 2
          %s803 = scalar_select %p802, %s25, 0
          %s804 = smul.u32 2, %s803
          %806 = vsyncadd %s795, 0
          %s807 = smul.addr %s804, 8
          %s808 = scalar_lea.hbm %s4, %s807
          %s809 = sshll.u32 %s798, 4
          %s810 = int_to_ptr.vmem [resolvable:$true] %s809
          %s811 = sshll.u32 %s808, 4
          %s812 = int_to_ptr.hbm [resolvable:$true] %s811
          %817 = dma.vmem_to_hbm [thread:$0]  %s810, 256, %s812, %s795, 128, 128, 8
        $region84: #{tpu_custom_call.1} parent=35 // pred_fallthru
          _
      $region36: #{tpu_custom_call.1} parent=5 // pred_fallthru
        _
      %p818 = scmp.le.s32.totalorder 2, %s15
      // Predicated region
      $region85: #{tpu_custom_call.1} parent=5 // pred_check
        %p819 = pneg %p818
      $region86: #{tpu_custom_call.1} parent=5 // pred_check_branch
        %821 = sbr.rel (%p819) target = $region88
      $region87: #{tpu_custom_call.1} parent=5 // pred_region
        %s822 = ssub.s32 %s15, 2
        // Predicated region
        $region89: #{tpu_custom_call.1} parent=87 // pred_check
          %p823 = pneg %p159
        $region90: #{tpu_custom_call.1} parent=87 // pred_check_branch
          %825 = sbr.rel (%p823) target = $region92
        $region91: #{tpu_custom_call.1} parent=87 // pred_region
          %s826 = sand.u32 %s144, 1
          %s827 = scalar_lea.sflag [#allocation6], %s826
          %s828 = sand.u32 %s144, 1
          %s829 = smul.addr %s828, 16
          %s830 = scalar_lea.vmem [#allocation11], %s829
          %832 = dma.done %s827, 256
        $region92: #{tpu_custom_call.1} parent=87 // pred_fallthru
          _
      $region88: #{tpu_custom_call.1} parent=5 // pred_fallthru
        _
    $region6: #{tpu_custom_call.1} parent=1 // loop_footer
      %s19 = sadd.s32 1, %s15
    $region7: #{tpu_custom_call.1} parent=1 // loop_footer_branch
      %14 = sbr.rel target = $region3
    $region8: #{tpu_custom_call.1} parent=1 // loop_exit
      _
    %833 = vsyncpa [#allocation5], 1
    %s834 = scalar_lea.sflag [#allocation5], 1
    %835 = vsyncpa %s834, 1
    %836 = vsyncpa [#allocation8], 1
    %837 = vsyncpa [#allocation6], 1
    %s838 = scalar_lea.sflag [#allocation6], 1
    %839 = vsyncpa %s838, 1

</llo_original>
